<compile_context>
chip_gen: v7x
topology: tpu7x:2x2x1
jax: 0.10.0
libtpu: 0.0.40
codegen_flags: <defaults>
</compile_context>

<pallas_src>
import jax
import jax.numpy as jnp
from jax.experimental import pallas as pl
from jax.experimental.pallas import tpu as pltpu

# ----------------------------- config (small, consistent with the module) ---------
BATCH = 1
SEQ = 16
D_MODEL = 128
NUM_HEADS = 4
HEAD_DIM = D_MODEL // NUM_HEADS          # 32
HALF = HEAD_DIM // 2                     # 16
MULTIPLE_OF = 4
EPS_LN = 1e-5                            # nn.LayerNorm default eps
EPS_RMS = 1e-5                           # Config.eps (reference passes `model_args.e`; typo)
SCALING = HEAD_DIM ** -0.5


def _swiglu_hidden(dim: int, multiple_of: int) -> int:
    h = 4 * dim
    h = int(2 * h / 3)
    return multiple_of * ((h + multiple_of - 1) // multiple_of)


HIDDEN = _swiglu_hidden(D_MODEL, MULTIPLE_OF)   # 344 (true torch hidden size)
HIDDEN_PAD = 384                                # next multiple of 128 (zero padded)

_FLOPS = (2 * SEQ * D_MODEL * (4 * D_MODEL + D_MODEL + 2 * HIDDEN_PAD)
          + 2 * SEQ * HIDDEN_PAD * D_MODEL
          + 4 * NUM_HEADS * SEQ * SEQ * HEAD_DIM)
_TRANSCENDENTALS = SEQ * HIDDEN_PAD + 4 * SEQ * NUM_HEADS
_BYTES = 520_000


# ----------------------------------- kernel ---------------------------------------
def _layernorm(h, gamma, beta):
    mu = jnp.mean(h, axis=-1, keepdims=True)
    var = jnp.mean((h - mu) ** 2, axis=-1, keepdims=True)
    return (h - mu) * jax.lax.rsqrt(var + EPS_LN) * gamma + beta


def _split_heads(t):
    # (S, D) -> (H, S, hd): 128-lane-aligned 32-lane slices stacked on a new leading axis
    return jnp.stack(
        [t[:, h * HEAD_DIM:(h + 1) * HEAD_DIM] for h in range(NUM_HEADS)], axis=0)


def block_kernel(x_ref, mask_ref,
                 g1_ref, b1_ref,
                 wqkvg_ref, bqkvg_ref,
                 rmsw_ref, wp_ref, bp_ref,
                 g2_ref, b2_ref,
                 w13_ref, w2_ref,
                 out_ref):
    f32 = jnp.float32
    bf16 = jnp.bfloat16
    x = x_ref[...]                                            # (S, D) f32

    # ---- norm1 (f32) ----
    h1 = _layernorm(x, g1_ref[...], b1_ref[...])

    # ---- fused Retation projections (rope + scaling already folded into weights) ----
    qkvg = jnp.dot(h1.astype(bf16), wqkvg_ref[...],
                   preferred_element_type=f32) + bqkvg_ref[...]        # (S, 4D) f32
    q_r = qkvg[:, 0 * D_MODEL:1 * D_MODEL]   # == rope_buggy(k * scaling)  (ref's q/k swap)
    k_r = qkvg[:, 1 * D_MODEL:2 * D_MODEL]   # == rope_buggy(q)
    v = qkvg[:, 2 * D_MODEL:3 * D_MODEL]
    g = qkvg[:, 3 * D_MODEL:4 * D_MODEL]

    # ---- batched per-head retention (f32 math) ----
    qh = _split_heads(q_r)                                    # (H, S, hd)
    kh = _split_heads(k_r)
    vh = _split_heads(v)

    ret = jax.lax.dot_general(qh, kh, (((2,), (2,)), ((0,), (0,))),
                              preferred_element_type=f32)     # (H, S, S)
    denom = jnp.clip(jnp.sum(jnp.abs(ret), axis=-1, keepdims=True), 1.0, 50000.0)
    ret = ret * pl.reciprocal(denom, approx=True) + mask_ref[...]
    o = jax.lax.dot_general(ret, vh, (((2,), (1,)), ((0,), (0,))),
                            preferred_element_type=f32)       # (H, S, hd)

    # RMSNorm statistics per head (weight multiply is deferred to after the merge,
    # using the head-tiled (1, D) weight).
    ms = jnp.mean(o * o, axis=-1, keepdims=True)
    o = o * jax.lax.rsqrt(ms + EPS_RMS)

    attn = jnp.concatenate([o[h] for h in range(NUM_HEADS)], axis=-1)  # (S, D) head-major
    attn = attn * rmsw_ref[...] * g
    attn = jnp.dot(attn.astype(bf16), wp_ref[...],
                   preferred_element_type=f32) + bp_ref[...]

    x1 = x + attn                                             # residual 1 (f32)

    # ---- norm2 + SwiGLU (dropout is identity at inference) ----
    h2 = _layernorm(x1, g2_ref[...], b2_ref[...])
    u = jnp.dot(h2.astype(bf16), w13_ref[...], preferred_element_type=f32)  # (S, 2*Hp)
    u1 = u[:, :HIDDEN_PAD]
    u3 = u[:, HIDDEN_PAD:]
    act = u1 * jax.nn.sigmoid(u1) * u3                        # f32; padded cols are 0
    ff = jnp.dot(act.astype(bf16), w2_ref[...], preferred_element_type=f32)

    out_ref[...] = x1 + ff                                    # residual 2


# ----------------------------------- wrapper ---------------------------------------
def _rope_matrix(freqs_sin):
    # Reproduces the reference apply_rope *as executed*:
    #  * called apply_rope(q, k, freqs_cos, freqs_sin) against signature (k, q, sin, cos)
    #    -> q and k come back swapped (handled via the fused-weight column order),
    #  * `freqs_sin = reshape_for_broadcast(freqs_cos, ...)` bug -> cos == sin == freqs_sin,
    #  * freqs have shape (num_heads, head_dim // 2) and broadcast over seq.
    # For pair p (lanes 2p, 2p+1), f = freqs_sin.flatten()[p]:
    #   out[2p]   = f * (t[2p] - t[2p+1]),   out[2p+1] = f * (t[2p] + t[2p+1])
    # i.e. rope_buggy(t) == t @ A with the block-diagonal A below.
    f_flat = freqs_sin.reshape(-1).astype(jnp.float32)        # (D/2,)
    f_col = jnp.repeat(f_flat, 2)[None, :]                    # (1, D)
    idx = jnp.arange(D_MODEL)
    row, col = idx[:, None], idx[None, :]
    same_pair = (row // 2) == (col // 2)
    sign = jnp.where((row % 2 == 1) & (col % 2 == 0), -1.0, 1.0)
    return jnp.where(same_pair, sign * f_col, 0.0)


@jax.jit
def block_forward(x, freqs_cos, freqs_sin, mask, params):
    # x: (1, S, D) f32;  freqs_*: (H, HEAD_DIM//2);  mask: (1, H, S, S)
    del freqs_cos   # unused by the reference due to the apply_rope bug (reproduced)
    p = params
    xs = x[0].astype(jnp.float32)
    mask_h = mask[0].astype(jnp.float32)                      # (H, S, S)
    rope_m = _rope_matrix(freqs_sin)                          # (D, D) f32

    # Fold rope + scaling into the projection weights (exact up to fp association):
    #   q_r = (h1 @ wk + bk) * SCALING @ rope_m ;  k_r = (h1 @ wq + bq) @ rope_m
    wq_eff = SCALING * (p["wk"] @ rope_m)
    bq_eff = SCALING * (p["bk"] @ rope_m)
    wk_eff = p["wq"] @ rope_m
    bk_eff = p["bq"] @ rope_m

    w_qkvg = jnp.concatenate([wq_eff, wk_eff, p["wv"], p["wg"]],
                             axis=1).astype(jnp.bfloat16)     # (D, 4D)
    b_qkvg = jnp.concatenate([bq_eff, bk_eff, p["bv"], p["bg"]], axis=1)  # (1, 4D) f32

    pad = HIDDEN_PAD - HIDDEN
    w1p = jnp.pad(p["w1"], ((0, 0), (0, pad)))
    w3p = jnp.pad(p["w3"], ((0, 0), (0, pad)))
    w13 = jnp.concatenate([w1p, w3p], axis=1).astype(jnp.bfloat16)      # (D, 2*Hp)
    w2p = jnp.pad(p["w2"], ((0, pad), (0, 0))).astype(jnp.bfloat16)     # (Hp, D)

    rms_full = jnp.tile(p["rms_w"], (1, NUM_HEADS))           # (1, D) head-tiled

    args = (
        xs, mask_h,
        p["ln1_g"], p["ln1_b"],
        w_qkvg, b_qkvg,
        rms_full, p["wp"].astype(jnp.bfloat16), p["bp"],
        p["ln2_g"], p["ln2_b"],
        w13, w2p,
    )
    vmem = pl.BlockSpec(memory_space=pltpu.MemorySpace.VMEM)
    out = pl.pallas_call(
        block_kernel,
        out_shape=jax.ShapeDtypeStruct((SEQ, D_MODEL), jnp.float32),
        in_specs=[vmem] * len(args),
        out_specs=vmem,
        cost_estimate=pl.CostEstimate(flops=_FLOPS,
                                      transcendentals=_TRANSCENDENTALS,
                                      bytes_accessed=_BYTES),
    )(*args)
    return out[None]                                          # (1, S, D)


# ------------------------------ pure-JAX reference ---------------------------------
# TODO(synk): the reference apply_rope's flatten(3) is a no-op on the stacked output, which
# makes the original torch forward produce 4-D q/k; we implement the clearly-intended
# pair-flatten back to (S, H, head_dim).
def reference_forward(x, freqs_cos, freqs_sin, mask, p):
    del freqs_cos
    xs = x[0].astype(jnp.float32)

    def ln(h, gamma, beta):
        mu = h.mean(-1, keepdims=True)
        var = ((h - mu) ** 2).mean(-1, keepdims=True)
        return (h - mu) / jnp.sqrt(var + EPS_LN) * gamma + beta

    h1 = ln(xs, p["ln1_g"], p["ln1_b"])
    k = h1 @ p["wk"] + p["bk"]
    q = h1 @ p["wq"] + p["bq"]
    v = h1 @ p["wv"] + p["bv"]
    g = h1 @ p["wg"] + p["bg"]
    k = k * SCALING

    k3 = k.reshape(SEQ, NUM_HEADS, HEAD_DIM)
    q3 = q.reshape(SEQ, NUM_HEADS, HEAD_DIM)
    v3 = v.reshape(SEQ, NUM_HEADS, HEAD_DIM)

    def rope_buggy(t):
        tr = t.reshape(SEQ, NUM_HEADS, HALF, 2)
        xr, xi = tr[..., 0], tr[..., 1]
        f = freqs_sin[None, :, :]                             # cos == sin == freqs_sin
        o_r = xr * f - xi * f
        o_i = xr * f + xi * f
        return jnp.stack([o_r, o_i], axis=-1).reshape(SEQ, NUM_HEADS, HEAD_DIM)

    q_r = rope_buggy(k3)                                      # swapped, as in the call
    k_r = rope_buggy(q3)

    qh, kh, vh = (t.transpose(1, 0, 2) for t in (q_r, k_r, v3))   # (H, S, hd)
    ret = jnp.einsum("hsd,htd->hst", qh, kh)
    denom = jnp.clip(jnp.abs(ret).sum(-1, keepdims=True), 1.0, 50000.0)
    ret = ret / denom + mask[0]
    o = jnp.einsum("hst,htd->hsd", ret, vh)
    ms = (o * o).mean(-1, keepdims=True)
    o = o * jax.lax.rsqrt(ms + EPS_RMS) * p["rms_w"][0]
    o = o.transpose(1, 0, 2).reshape(SEQ, D_MODEL)
    o = o * g
    attn = o @ p["wp"] + p["bp"]
    x1 = xs + attn

    h2 = ln(x1, p["ln2_g"], p["ln2_b"])
    u1 = h2 @ p["w1"]
    u3 = h2 @ p["w3"]
    ff = (u1 * jax.nn.sigmoid(u1) * u3) @ p["w2"]
    return (x1 + ff)[None]


# ----------------------------------- params ----------------------------------------
def init_params(key):
    # Weights stored as (in, out): y = x @ W + b  (equivalent parameterization of
    # torch Linear y = x @ W^T + b; values are synthetic and deterministic).
    ks = jax.random.split(key, 13)

    def w(k, shape, scale=0.05):
        return scale * jax.random.normal(k, shape, jnp.float32)

    return dict(
        ln1_g=jnp.ones((1, D_MODEL), jnp.float32),
        ln1_b=jnp.zeros((1, D_MODEL), jnp.float32),
        ln2_g=jnp.ones((1, D_MODEL), jnp.float32),
        ln2_b=jnp.zeros((1, D_MODEL), jnp.float32),
        rms_w=jnp.ones((1, HEAD_DIM), jnp.float32),
        wk=w(ks[0], (D_MODEL, D_MODEL)), bk=w(ks[1], (1, D_MODEL), 0.02),
        wq=w(ks[2], (D_MODEL, D_MODEL)), bq=w(ks[3], (1, D_MODEL), 0.02),
        wv=w(ks[4], (D_MODEL, D_MODEL)), bv=w(ks[5], (1, D_MODEL), 0.02),
        wg=w(ks[6], (D_MODEL, D_MODEL)), bg=w(ks[7], (1, D_MODEL), 0.02),
        wp=w(ks[8], (D_MODEL, D_MODEL)), bp=w(ks[9], (1, D_MODEL), 0.02),
        w1=w(ks[10], (D_MODEL, HIDDEN)),        # SwiGLU (bias=False)
        w3=w(ks[11], (D_MODEL, HIDDEN)),
        w2=w(ks[12], (HIDDEN, D_MODEL)),
    )


# ------------------------------------ main ------------------------------------------
if __name__ == "__main__":
    key = jax.random.PRNGKey(0)
    kx, kmask, kparams = jax.random.split(key, 3)

    x = jax.random.normal(kx, (BATCH, SEQ, D_MODEL), jnp.float32)
    pos = jnp.arange(HALF, dtype=jnp.float32)
    hh = jnp.arange(NUM_HEADS, dtype=jnp.float32)[:, None] + 1.0
    # reshape_for_broadcast asserts freqs.shape == (num_heads, head_dim // 2)
    freqs_cos = jnp.cos(hh * pos[None, :] * 0.3)
    freqs_sin = jnp.sin(hh * pos[None, :] * 0.3)
    # additive retention mask (finite, deterministic)
    mask = 0.1 * jax.random.normal(kmask, (BATCH, NUM_HEADS, SEQ, SEQ), jnp.float32)

    params = init_params(kparams)

    out = block_forward(x, freqs_cos, freqs_sin, mask, params)
    out = jax.block_until_ready(out)

    ref = reference_forward(x, freqs_cos, freqs_sin, mask, params)
    assert out.shape == (BATCH, SEQ, D_MODEL)
    assert bool(jnp.all(jnp.isfinite(out)))
    rel = float(jnp.max(jnp.abs(out - ref)) / (jnp.max(jnp.abs(ref)) + 1e-6))
    assert rel < 5e-2, f"kernel/reference mismatch: rel={rel}"
    print("KERNEL_OK")
</pallas_src>

<mosaic_0001>
module attributes {stable_mosaic.version = 11 : i64} {
  func.func @block_kernel(%arg0: memref<16x128xf32, #tpu.memory_space<vmem>>, %arg1: memref<4x16x16xf32, #tpu.memory_space<vmem>>, %arg2: memref<1x128xf32, #tpu.memory_space<vmem>>, %arg3: memref<1x128xf32, #tpu.memory_space<vmem>>, %arg4: memref<128x512xbf16, #tpu.memory_space<vmem>>, %arg5: memref<1x512xf32, #tpu.memory_space<vmem>>, %arg6: memref<1x128xf32, #tpu.memory_space<vmem>>, %arg7: memref<128x128xbf16, #tpu.memory_space<vmem>>, %arg8: memref<1x128xf32, #tpu.memory_space<vmem>>, %arg9: memref<1x128xf32, #tpu.memory_space<vmem>>, %arg10: memref<1x128xf32, #tpu.memory_space<vmem>>, %arg11: memref<128x768xbf16, #tpu.memory_space<vmem>>, %arg12: memref<384x128xbf16, #tpu.memory_space<vmem>>, %arg13: memref<16x128xf32, #tpu.memory_space<vmem>>) attributes {dimension_semantics = [], scalar_prefetch = 0 : i64, scratch_operands = 0 : i64, tpu.core_type = #tpu.core_type<tc>} {
    %c0 = arith.constant 0 : index
    %c0_0 = arith.constant 0 : index
    %0 = vector.load %arg0[%c0, %c0_0] : memref<16x128xf32, #tpu.memory_space<vmem>>, vector<16x128xf32>
    %c0_1 = arith.constant 0 : index
    %c0_2 = arith.constant 0 : index
    %1 = vector.load %arg2[%c0_1, %c0_2] : memref<1x128xf32, #tpu.memory_space<vmem>>, vector<1x128xf32>
    %c0_3 = arith.constant 0 : index
    %c0_4 = arith.constant 0 : index
    %2 = vector.load %arg3[%c0_3, %c0_4] : memref<1x128xf32, #tpu.memory_space<vmem>>, vector<1x128xf32>
    %cst = arith.constant dense<0.000000e+00> : vector<16xf32>
    %3 = vector.multi_reduction <add>, %0, %cst [1] : vector<16x128xf32> to vector<16xf32>
    %4 = vector.shape_cast %3 : vector<16xf32> to vector<16x1xf32>
    %cst_5 = arith.constant 1.280000e+02 : f32
    %5 = vector.broadcast %cst_5 : f32 to vector<16x1xf32>
    %6 = arith.divf %4, %5 : vector<16x1xf32>
    %7 = vector.broadcast %6 : vector<16x1xf32> to vector<16x128xf32>
    %8 = arith.subf %0, %7 : vector<16x128xf32>
    %9 = arith.mulf %8, %8 : vector<16x128xf32>
    %cst_6 = arith.constant dense<0.000000e+00> : vector<16xf32>
    %10 = vector.multi_reduction <add>, %9, %cst_6 [1] : vector<16x128xf32> to vector<16xf32>
    %11 = vector.shape_cast %10 : vector<16xf32> to vector<16x1xf32>
    %cst_7 = arith.constant 1.280000e+02 : f32
    %12 = vector.broadcast %cst_7 : f32 to vector<16x1xf32>
    %13 = arith.divf %11, %12 : vector<16x1xf32>
    %14 = vector.broadcast %6 : vector<16x1xf32> to vector<16x128xf32>
    %15 = arith.subf %0, %14 : vector<16x128xf32>
    %cst_8 = arith.constant 9.99999974E-6 : f32
    %16 = vector.broadcast %cst_8 : f32 to vector<16x1xf32>
    %17 = arith.addf %13, %16 : vector<16x1xf32>
    %18 = math.rsqrt %17 : vector<16x1xf32>
    %19 = vector.broadcast %18 : vector<16x1xf32> to vector<16x128xf32>
    %20 = arith.mulf %15, %19 : vector<16x128xf32>
    %21 = vector.broadcast %1 : vector<1x128xf32> to vector<16x128xf32>
    %22 = arith.mulf %20, %21 : vector<16x128xf32>
    %23 = vector.broadcast %2 : vector<1x128xf32> to vector<16x128xf32>
    %24 = arith.addf %22, %23 : vector<16x128xf32>
    %25 = arith.truncf %24 : vector<16x128xf32> to vector<16x128xbf16>
    %c0_9 = arith.constant 0 : index
    %c0_10 = arith.constant 0 : index
    %26 = vector.load %arg4[%c0_9, %c0_10] : memref<128x512xbf16, #tpu.memory_space<vmem>>, vector<128x512xbf16>
    %cst_11 = arith.constant dense<0.000000e+00> : vector<16x512xf32>
    %27 = tpu.matmul %25, %26, %cst_11 {dimension_numbers = #tpu.dot_dimension_numbers<[1], [0], [0], [1], [0, 0, 1, 1], [], []>} : vector<16x128xbf16>, vector<128x512xbf16>, vector<16x512xf32> -> vector<16x512xf32>
    %c0_12 = arith.constant 0 : index
    %c0_13 = arith.constant 0 : index
    %28 = vector.load %arg5[%c0_12, %c0_13] : memref<1x512xf32, #tpu.memory_space<vmem>>, vector<1x512xf32>
    %29 = vector.broadcast %28 : vector<1x512xf32> to vector<16x512xf32>
    %30 = arith.addf %27, %29 : vector<16x512xf32>
    %31 = vector.extract_strided_slice %30 {offsets = [0, 0], sizes = [16, 128], strides = [1, 1]} : vector<16x512xf32> to vector<16x128xf32>
    %32 = vector.extract_strided_slice %30 {offsets = [0, 128], sizes = [16, 128], strides = [1, 1]} : vector<16x512xf32> to vector<16x128xf32>
    %33 = vector.extract_strided_slice %30 {offsets = [0, 256], sizes = [16, 128], strides = [1, 1]} : vector<16x512xf32> to vector<16x128xf32>
    %34 = vector.extract_strided_slice %30 {offsets = [0, 384], sizes = [16, 128], strides = [1, 1]} : vector<16x512xf32> to vector<16x128xf32>
    %35 = vector.extract_strided_slice %31 {offsets = [0, 0], sizes = [16, 32], strides = [1, 1]} : vector<16x128xf32> to vector<16x32xf32>
    %36 = vector.extract_strided_slice %31 {offsets = [0, 32], sizes = [16, 32], strides = [1, 1]} : vector<16x128xf32> to vector<16x32xf32>
    %37 = vector.extract_strided_slice %31 {offsets = [0, 64], sizes = [16, 32], strides = [1, 1]} : vector<16x128xf32> to vector<16x32xf32>
    %38 = vector.extract_strided_slice %31 {offsets = [0, 96], sizes = [16, 32], strides = [1, 1]} : vector<16x128xf32> to vector<16x32xf32>
    %39 = vector.shape_cast %35 : vector<16x32xf32> to vector<1x16x32xf32>
    %40 = vector.shape_cast %36 : vector<16x32xf32> to vector<1x16x32xf32>
    %41 = vector.shape_cast %37 : vector<16x32xf32> to vector<1x16x32xf32>
    %42 = vector.shape_cast %38 : vector<16x32xf32> to vector<1x16x32xf32>
    %43 = tpu.concatenate %39, %40, %41, %42 in 0 : vector<1x16x32xf32>, vector<1x16x32xf32>, vector<1x16x32xf32>, vector<1x16x32xf32> -> vector<4x16x32xf32>
    %44 = vector.extract_strided_slice %32 {offsets = [0, 0], sizes = [16, 32], strides = [1, 1]} : vector<16x128xf32> to vector<16x32xf32>
    %45 = vector.extract_strided_slice %32 {offsets = [0, 32], sizes = [16, 32], strides = [1, 1]} : vector<16x128xf32> to vector<16x32xf32>
    %46 = vector.extract_strided_slice %32 {offsets = [0, 64], sizes = [16, 32], strides = [1, 1]} : vector<16x128xf32> to vector<16x32xf32>
    %47 = vector.extract_strided_slice %32 {offsets = [0, 96], sizes = [16, 32], strides = [1, 1]} : vector<16x128xf32> to vector<16x32xf32>
    %48 = vector.shape_cast %44 : vector<16x32xf32> to vector<1x16x32xf32>
    %49 = vector.shape_cast %45 : vector<16x32xf32> to vector<1x16x32xf32>
    %50 = vector.shape_cast %46 : vector<16x32xf32> to vector<1x16x32xf32>
    %51 = vector.shape_cast %47 : vector<16x32xf32> to vector<1x16x32xf32>
    %52 = tpu.concatenate %48, %49, %50, %51 in 0 : vector<1x16x32xf32>, vector<1x16x32xf32>, vector<1x16x32xf32>, vector<1x16x32xf32> -> vector<4x16x32xf32>
    %53 = vector.extract_strided_slice %33 {offsets = [0, 0], sizes = [16, 32], strides = [1, 1]} : vector<16x128xf32> to vector<16x32xf32>
    %54 = vector.extract_strided_slice %33 {offsets = [0, 32], sizes = [16, 32], strides = [1, 1]} : vector<16x128xf32> to vector<16x32xf32>
    %55 = vector.extract_strided_slice %33 {offsets = [0, 64], sizes = [16, 32], strides = [1, 1]} : vector<16x128xf32> to vector<16x32xf32>
    %56 = vector.extract_strided_slice %33 {offsets = [0, 96], sizes = [16, 32], strides = [1, 1]} : vector<16x128xf32> to vector<16x32xf32>
    %57 = vector.shape_cast %53 : vector<16x32xf32> to vector<1x16x32xf32>
    %58 = vector.shape_cast %54 : vector<16x32xf32> to vector<1x16x32xf32>
    %59 = vector.shape_cast %55 : vector<16x32xf32> to vector<1x16x32xf32>
    %60 = vector.shape_cast %56 : vector<16x32xf32> to vector<1x16x32xf32>
    %61 = tpu.concatenate %57, %58, %59, %60 in 0 : vector<1x16x32xf32>, vector<1x16x32xf32>, vector<1x16x32xf32>, vector<1x16x32xf32> -> vector<4x16x32xf32>
    %cst_14 = arith.constant dense<0.000000e+00> : vector<4x16x16xf32>
    %62 = tpu.matmul %43, %52, %cst_14 {dimension_numbers = #tpu.dot_dimension_numbers<[2], [2], [1], [1], [0, 0, 0, 1, 1, 1], [0], [0]>} : vector<4x16x32xf32>, vector<4x16x32xf32>, vector<4x16x16xf32> -> vector<4x16x16xf32>
    %63 = math.absf %62 : vector<4x16x16xf32>
    %cst_15 = arith.constant dense<0.000000e+00> : vector<4x16xf32>
    %64 = vector.multi_reduction <add>, %63, %cst_15 [2] : vector<4x16x16xf32> to vector<4x16xf32>
    %65 = vector.shape_cast %64 : vector<4x16xf32> to vector<4x16x1xf32>
    %cst_16 = arith.constant 1.000000e+00 : f32
    %cst_17 = arith.constant 5.000000e+04 : f32
    %66 = vector.broadcast %cst_16 : f32 to vector<4x16x1xf32>
    %67 = arith.maximumf %66, %65 : vector<4x16x1xf32>
    %68 = vector.broadcast %cst_17 : f32 to vector<4x16x1xf32>
    %69 = arith.minimumf %68, %67 : vector<4x16x1xf32>
    %70 = tpu.reciprocal %69 {approx = true} : vector<4x16x1xf32> -> vector<4x16x1xf32>
    %71 = vector.broadcast %70 : vector<4x16x1xf32> to vector<4x16x16xf32>
    %72 = arith.mulf %62, %71 : vector<4x16x16xf32>
    %c0_18 = arith.constant 0 : index
    %c0_19 = arith.constant 0 : index
    %c0_20 = arith.constant 0 : index
    %73 = vector.load %arg1[%c0_18, %c0_19, %c0_20] : memref<4x16x16xf32, #tpu.memory_space<vmem>>, vector<4x16x16xf32>
    %74 = arith.addf %72, %73 : vector<4x16x16xf32>
    %cst_21 = arith.constant dense<0.000000e+00> : vector<4x16x32xf32>
    %75 = tpu.matmul %74, %61, %cst_21 {dimension_numbers = #tpu.dot_dimension_numbers<[2], [1], [1], [2], [0, 0, 0, 1, 1, 2], [0], [0]>} : vector<4x16x16xf32>, vector<4x16x32xf32>, vector<4x16x32xf32> -> vector<4x16x32xf32>
    %76 = arith.mulf %75, %75 : vector<4x16x32xf32>
    %cst_22 = arith.constant dense<0.000000e+00> : vector<4x16xf32>
    %77 = vector.multi_reduction <add>, %76, %cst_22 [2] : vector<4x16x32xf32> to vector<4x16xf32>
    %78 = vector.shape_cast %77 : vector<4x16xf32> to vector<4x16x1xf32>
    %cst_23 = arith.constant 3.200000e+01 : f32
    %79 = vector.broadcast %cst_23 : f32 to vector<4x16x1xf32>
    %80 = arith.divf %78, %79 : vector<4x16x1xf32>
    %cst_24 = arith.constant 9.99999974E-6 : f32
    %81 = vector.broadcast %cst_24 : f32 to vector<4x16x1xf32>
    %82 = arith.addf %80, %81 : vector<4x16x1xf32>
    %83 = math.rsqrt %82 : vector<4x16x1xf32>
    %84 = vector.broadcast %83 : vector<4x16x1xf32> to vector<4x16x32xf32>
    %85 = arith.mulf %75, %84 : vector<4x16x32xf32>
    %86 = vector.extract_strided_slice %85 {offsets = [0, 0, 0], sizes = [1, 16, 32], strides = [1, 1, 1]} : vector<4x16x32xf32> to vector<1x16x32xf32>
    %87 = vector.shape_cast %86 : vector<1x16x32xf32> to vector<16x32xf32>
    %88 = vector.extract_strided_slice %85 {offsets = [1, 0, 0], sizes = [1, 16, 32], strides = [1, 1, 1]} : vector<4x16x32xf32> to vector<1x16x32xf32>
    %89 = vector.shape_cast %88 : vector<1x16x32xf32> to vector<16x32xf32>
    %90 = vector.extract_strided_slice %85 {offsets = [2, 0, 0], sizes = [1, 16, 32], strides = [1, 1, 1]} : vector<4x16x32xf32> to vector<1x16x32xf32>
    %91 = vector.shape_cast %90 : vector<1x16x32xf32> to vector<16x32xf32>
    %92 = vector.extract_strided_slice %85 {offsets = [3, 0, 0], sizes = [1, 16, 32], strides = [1, 1, 1]} : vector<4x16x32xf32> to vector<1x16x32xf32>
    %93 = vector.shape_cast %92 : vector<1x16x32xf32> to vector<16x32xf32>
    %94 = tpu.concatenate %87, %89, %91, %93 in 1 : vector<16x32xf32>, vector<16x32xf32>, vector<16x32xf32>, vector<16x32xf32> -> vector<16x128xf32>
    %c0_25 = arith.constant 0 : index
    %c0_26 = arith.constant 0 : index
    %95 = vector.load %arg6[%c0_25, %c0_26] : memref<1x128xf32, #tpu.memory_space<vmem>>, vector<1x128xf32>
    %96 = vector.broadcast %95 : vector<1x128xf32> to vector<16x128xf32>
    %97 = arith.mulf %94, %96 : vector<16x128xf32>
    %98 = arith.mulf %97, %34 : vector<16x128xf32>
    %99 = arith.truncf %98 : vector<16x128xf32> to vector<16x128xbf16>
    %c0_27 = arith.constant 0 : index
    %c0_28 = arith.constant 0 : index
    %100 = vector.load %arg7[%c0_27, %c0_28] : memref<128x128xbf16, #tpu.memory_space<vmem>>, vector<128x128xbf16>
    %cst_29 = arith.constant dense<0.000000e+00> : vector<16x128xf32>
    %101 = tpu.matmul %99, %100, %cst_29 {dimension_numbers = #tpu.dot_dimension_numbers<[1], [0], [0], [1], [0, 0, 1, 1], [], []>} : vector<16x128xbf16>, vector<128x128xbf16>, vector<16x128xf32> -> vector<16x128xf32>
    %c0_30 = arith.constant 0 : index
    %c0_31 = arith.constant 0 : index
    %102 = vector.load %arg8[%c0_30, %c0_31] : memref<1x128xf32, #tpu.memory_space<vmem>>, vector<1x128xf32>
    %103 = vector.broadcast %102 : vector<1x128xf32> to vector<16x128xf32>
    %104 = arith.addf %101, %103 : vector<16x128xf32>
    %105 = arith.addf %0, %104 : vector<16x128xf32>
    %c0_32 = arith.constant 0 : index
    %c0_33 = arith.constant 0 : index
    %106 = vector.load %arg9[%c0_32, %c0_33] : memref<1x128xf32, #tpu.memory_space<vmem>>, vector<1x128xf32>
    %c0_34 = arith.constant 0 : index
    %c0_35 = arith.constant 0 : index
    %107 = vector.load %arg10[%c0_34, %c0_35] : memref<1x128xf32, #tpu.memory_space<vmem>>, vector<1x128xf32>
    %cst_36 = arith.constant dense<0.000000e+00> : vector<16xf32>
    %108 = vector.multi_reduction <add>, %105, %cst_36 [1] : vector<16x128xf32> to vector<16xf32>
    %109 = vector.shape_cast %108 : vector<16xf32> to vector<16x1xf32>
    %cst_37 = arith.constant 1.280000e+02 : f32
    %110 = vector.broadcast %cst_37 : f32 to vector<16x1xf32>
    %111 = arith.divf %109, %110 : vector<16x1xf32>
    %112 = vector.broadcast %111 : vector<16x1xf32> to vector<16x128xf32>
    %113 = arith.subf %105, %112 : vector<16x128xf32>
    %114 = arith.mulf %113, %113 : vector<16x128xf32>
    %cst_38 = arith.constant dense<0.000000e+00> : vector<16xf32>
    %115 = vector.multi_reduction <add>, %114, %cst_38 [1] : vector<16x128xf32> to vector<16xf32>
    %116 = vector.shape_cast %115 : vector<16xf32> to vector<16x1xf32>
    %cst_39 = arith.constant 1.280000e+02 : f32
    %117 = vector.broadcast %cst_39 : f32 to vector<16x1xf32>
    %118 = arith.divf %116, %117 : vector<16x1xf32>
    %119 = vector.broadcast %111 : vector<16x1xf32> to vector<16x128xf32>
    %120 = arith.subf %105, %119 : vector<16x128xf32>
    %cst_40 = arith.constant 9.99999974E-6 : f32
    %121 = vector.broadcast %cst_40 : f32 to vector<16x1xf32>
    %122 = arith.addf %118, %121 : vector<16x1xf32>
    %123 = math.rsqrt %122 : vector<16x1xf32>
    %124 = vector.broadcast %123 : vector<16x1xf32> to vector<16x128xf32>
    %125 = arith.mulf %120, %124 : vector<16x128xf32>
    %126 = vector.broadcast %106 : vector<1x128xf32> to vector<16x128xf32>
    %127 = arith.mulf %125, %126 : vector<16x128xf32>
    %128 = vector.broadcast %107 : vector<1x128xf32> to vector<16x128xf32>
    %129 = arith.addf %127, %128 : vector<16x128xf32>
    %130 = arith.truncf %129 : vector<16x128xf32> to vector<16x128xbf16>
    %c0_41 = arith.constant 0 : index
    %c0_42 = arith.constant 0 : index
    %131 = vector.load %arg11[%c0_41, %c0_42] : memref<128x768xbf16, #tpu.memory_space<vmem>>, vector<128x768xbf16>
    %cst_43 = arith.constant dense<0.000000e+00> : vector<16x768xf32>
    %132 = tpu.matmul %130, %131, %cst_43 {dimension_numbers = #tpu.dot_dimension_numbers<[1], [0], [0], [1], [0, 0, 1, 1], [], []>} : vector<16x128xbf16>, vector<128x768xbf16>, vector<16x768xf32> -> vector<16x768xf32>
    %133 = vector.extract_strided_slice %132 {offsets = [0, 0], sizes = [16, 384], strides = [1, 1]} : vector<16x768xf32> to vector<16x384xf32>
    %134 = vector.extract_strided_slice %132 {offsets = [0, 384], sizes = [16, 384], strides = [1, 1]} : vector<16x768xf32> to vector<16x384xf32>
    %135 = arith.negf %133 : vector<16x384xf32>
    %136 = math.exp %135 : vector<16x384xf32>
    %cst_44 = arith.constant 1.000000e+00 : f32
    %137 = vector.broadcast %cst_44 : f32 to vector<16x384xf32>
    %138 = arith.addf %137, %136 : vector<16x384xf32>
    %139 = arith.divf %137, %138 : vector<16x384xf32>
    %140 = arith.mulf %133, %139 : vector<16x384xf32>
    %141 = arith.mulf %140, %134 : vector<16x384xf32>
    %142 = arith.truncf %141 : vector<16x384xf32> to vector<16x384xbf16>
    %c0_45 = arith.constant 0 : index
    %c0_46 = arith.constant 0 : index
    %143 = vector.load %arg12[%c0_45, %c0_46] : memref<384x128xbf16, #tpu.memory_space<vmem>>, vector<384x128xbf16>
    %cst_47 = arith.constant dense<0.000000e+00> : vector<16x128xf32>
    %144 = tpu.matmul %142, %143, %cst_47 {dimension_numbers = #tpu.dot_dimension_numbers<[1], [0], [0], [1], [0, 0, 1, 1], [], []>} : vector<16x384xbf16>, vector<384x128xbf16>, vector<16x128xf32> -> vector<16x128xf32>
    %145 = arith.addf %105, %144 : vector<16x128xf32>
    %c0_48 = arith.constant 0 : index
    %c0_49 = arith.constant 0 : index
    %146 = vector.load %arg13[%c0_48, %c0_49] : memref<16x128xf32, #tpu.memory_space<vmem>>, vector<16x128xf32>
    tpu.vector_store %arg13[%c0_48, %c0_49], %145 {strides = array<i32>} : memref<16x128xf32, #tpu.memory_space<vmem>>, vector<16x128xf32>,
    return
  }
}

</mosaic_0001>

<llo_original>
// kernel: mul.11
$region0: #{mul.11}
  %s0 = inlined_call_operand.vmem [shape: f32[64,2], index: 0, kind: input, shape index: {}]
  %s1 = inlined_call_operand.vmem [shape: f32[128], index: 1, kind: output, shape index: {}]
  $region1: #{mul.11} parent=0
    #allocation0 [shape = 'u8[4096]{0}', space=vmem, size = 0x1000, scoped, tag = 'scoped mem for output reshape']
    %v2 = vld [vmem:[%s0] sm:$0x1]
    %vm3 = vcmask 15360
    %4 = vst.msk [vmem:[#allocation0] sm:$0x1] %vm3, %v2
    %s5 = scalar_lea.vmem %s0, 63
    %v6 = vld [vmem:[%s5] sm:$0x1]
    %7 = vrot.lane.b32.xlu0 %v6, 126
    %v8 = vpop.permute.xlu0 %7
    %vm9 = vcmask 1048560
    %10 = vst.msk [vmem:[#allocation0] sm:$0x1] %vm9, %v8
    %s11 = scalar_lea.vmem %s0, 62
    %v12 = vld [vmem:[%s11] sm:$0x1]
    %13 = vrot.lane.b32.xlu0 %v12, 124
    %v14 = vpop.permute.xlu0 %13
    %vm15 = vcmask 1032160
    %16 = vst.msk [vmem:[#allocation0] sm:$0x1] %vm15, %v14
    %s17 = scalar_lea.vmem %s0, 61
    %v18 = vld [vmem:[%s17] sm:$0x1]
    %19 = vrot.lane.b32.xlu0 %v18, 122
    %v20 = vpop.permute.xlu0 %19
    %vm21 = vcmask 1015760
    %22 = vst.msk [vmem:[#allocation0] sm:$0x1] %vm21, %v20
    %s23 = scalar_lea.vmem %s0, 60
    %v24 = vld [vmem:[%s23] sm:$0x1]
    %25 = vrot.lane.b32.xlu0 %v24, 120
    %v26 = vpop.permute.xlu0 %25
    %vm27 = vcmask 999360
    %28 = vst.msk [vmem:[#allocation0] sm:$0x1] %vm27, %v26
    %s29 = scalar_lea.vmem %s0, 59
    %v30 = vld [vmem:[%s29] sm:$0x1]
    %31 = vrot.lane.b32.xlu0 %v30, 118
    %v32 = vpop.permute.xlu0 %31
    %vm33 = vcmask 982960
    %34 = vst.msk [vmem:[#allocation0] sm:$0x1] %vm33, %v32
    %s35 = scalar_lea.vmem %s0, 58
    %v36 = vld [vmem:[%s35] sm:$0x1]
    %37 = vrot.lane.b32.xlu0 %v36, 116
    %v38 = vpop.permute.xlu0 %37
    %vm39 = vcmask 966560
    %40 = vst.msk [vmem:[#allocation0] sm:$0x1] %vm39, %v38
    %s41 = scalar_lea.vmem %s0, 57
    %v42 = vld [vmem:[%s41] sm:$0x1]
    %43 = vrot.lane.b32.xlu0 %v42, 114
    %v44 = vpop.permute.xlu0 %43
    %vm45 = vcmask 950160
    %46 = vst.msk [vmem:[#allocation0] sm:$0x1] %vm45, %v44
    %s47 = scalar_lea.vmem %s0, 56
    %v48 = vld [vmem:[%s47] sm:$0x1]
    %49 = vrot.lane.b32.xlu0 %v48, 112
    %v50 = vpop.permute.xlu0 %49
    %vm51 = vcmask 933760
    %52 = vst.msk [vmem:[#allocation0] sm:$0x1] %vm51, %v50
    %s53 = scalar_lea.vmem %s0, 55
    %v54 = vld [vmem:[%s53] sm:$0x1]
    %55 = vrot.lane.b32.xlu0 %v54, 110
    %v56 = vpop.permute.xlu0 %55
    %vm57 = vcmask 917360
    %58 = vst.msk [vmem:[#allocation0] sm:$0x1] %vm57, %v56
    %s59 = scalar_lea.vmem %s0, 54
    %v60 = vld [vmem:[%s59] sm:$0x1]
    %61 = vrot.lane.b32.xlu0 %v60, 108
    %v62 = vpop.permute.xlu0 %61
    %vm63 = vcmask 900960
    %64 = vst.msk [vmem:[#allocation0] sm:$0x1] %vm63, %v62
    %s65 = scalar_lea.vmem %s0, 53
    %v66 = vld [vmem:[%s65] sm:$0x1]
    %67 = vrot.lane.b32.xlu0 %v66, 106
    %v68 = vpop.permute.xlu0 %67
    %vm69 = vcmask 884560
    %70 = vst.msk [vmem:[#allocation0] sm:$0x1] %vm69, %v68
    %s71 = scalar_lea.vmem %s0, 52
    %v72 = vld [vmem:[%s71] sm:$0x1]
    %73 = vrot.lane.b32.xlu0 %v72, 104
    %v74 = vpop.permute.xlu0 %73
    %vm75 = vcmask 868160
    %76 = vst.msk [vmem:[#allocation0] sm:$0x1] %vm75, %v74
    %s77 = scalar_lea.vmem %s0, 51
    %v78 = vld [vmem:[%s77] sm:$0x1]
    %79 = vrot.lane.b32.xlu0 %v78, 102
    %v80 = vpop.permute.xlu0 %79
    %vm81 = vcmask 851760
    %82 = vst.msk [vmem:[#allocation0] sm:$0x1] %vm81, %v80
    %s83 = scalar_lea.vmem %s0, 50
    %v84 = vld [vmem:[%s83] sm:$0x1]
    %85 = vrot.lane.b32.xlu0 %v84, 100
    %v86 = vpop.permute.xlu0 %85
    %vm87 = vcmask 835360
    %88 = vst.msk [vmem:[#allocation0] sm:$0x1] %vm87, %v86
    %s89 = scalar_lea.vmem %s0, 49
    %v90 = vld [vmem:[%s89] sm:$0x1]
    %91 = vrot.lane.b32.xlu0 %v90, 98
    %v92 = vpop.permute.xlu0 %91
    %vm93 = vcmask 818960
    %94 = vst.msk [vmem:[#allocation0] sm:$0x1] %vm93, %v92
    %s95 = scalar_lea.vmem %s0, 48
    %v96 = vld [vmem:[%s95] sm:$0x1]
    %97 = vrot.lane.b32.xlu0 %v96, 96
    %v98 = vpop.permute.xlu0 %97
    %vm99 = vcmask 802560
    %100 = vst.msk [vmem:[#allocation0] sm:$0x1] %vm99, %v98
    %s101 = scalar_lea.vmem %s0, 47
    %v102 = vld [vmem:[%s101] sm:$0x1]
    %103 = vrot.lane.b32.xlu0 %v102, 94
    %v104 = vpop.permute.xlu0 %103
    %vm105 = vcmask 786160
    %106 = vst.msk [vmem:[#allocation0] sm:$0x1] %vm105, %v104
    %s107 = scalar_lea.vmem %s0, 46
    %v108 = vld [vmem:[%s107] sm:$0x1]
    %109 = vrot.lane.b32.xlu0 %v108, 92
    %v110 = vpop.permute.xlu0 %109
    %vm111 = vcmask 769760
    %112 = vst.msk [vmem:[#allocation0] sm:$0x1] %vm111, %v110
    %s113 = scalar_lea.vmem %s0, 45
    %v114 = vld [vmem:[%s113] sm:$0x1]
    %115 = vrot.lane.b32.xlu0 %v114, 90
    %v116 = vpop.permute.xlu0 %115
    %vm117 = vcmask 753360
    %118 = vst.msk [vmem:[#allocation0] sm:$0x1] %vm117, %v116
    %s119 = scalar_lea.vmem %s0, 44
    %v120 = vld [vmem:[%s119] sm:$0x1]
    %121 = vrot.lane.b32.xlu0 %v120, 88
    %v122 = vpop.permute.xlu0 %121
    %vm123 = vcmask 736960
    %124 = vst.msk [vmem:[#allocation0] sm:$0x1] %vm123, %v122
    %s125 = scalar_lea.vmem %s0, 43
    %v126 = vld [vmem:[%s125] sm:$0x1]
    %127 = vrot.lane.b32.xlu0 %v126, 86
    %v128 = vpop.permute.xlu0 %127
    %vm129 = vcmask 720560
    %130 = vst.msk [vmem:[#allocation0] sm:$0x1] %vm129, %v128
    %s131 = scalar_lea.vmem %s0, 42
    %v132 = vld [vmem:[%s131] sm:$0x1]
    %133 = vrot.lane.b32.xlu0 %v132, 84
    %v134 = vpop.permute.xlu0 %133
    %vm135 = vcmask 704160
    %136 = vst.msk [vmem:[#allocation0] sm:$0x1] %vm135, %v134
    %s137 = scalar_lea.vmem %s0, 41
    %v138 = vld [vmem:[%s137] sm:$0x1]
    %139 = vrot.lane.b32.xlu0 %v138, 82
    %v140 = vpop.permute.xlu0 %139
    %vm141 = vcmask 687760
    %142 = vst.msk [vmem:[#allocation0] sm:$0x1] %vm141, %v140
    %s143 = scalar_lea.vmem %s0, 40
    %v144 = vld [vmem:[%s143] sm:$0x1]
    %145 = vrot.lane.b32.xlu0 %v144, 80
    %v146 = vpop.permute.xlu0 %145
    %vm147 = vcmask 671360
    %148 = vst.msk [vmem:[#allocation0] sm:$0x1] %vm147, %v146
    %s149 = scalar_lea.vmem %s0, 39
    %v150 = vld [vmem:[%s149] sm:$0x1]
    %151 = vrot.lane.b32.xlu0 %v150, 78
    %v152 = vpop.permute.xlu0 %151
    %vm153 = vcmask 654960
    %154 = vst.msk [vmem:[#allocation0] sm:$0x1] %vm153, %v152
    %s155 = scalar_lea.vmem %s0, 38
    %v156 = vld [vmem:[%s155] sm:$0x1]
    %157 = vrot.lane.b32.xlu0 %v156, 76
    %v158 = vpop.permute.xlu0 %157
    %vm159 = vcmask 638560
    %160 = vst.msk [vmem:[#allocation0] sm:$0x1] %vm159, %v158
    %s161 = scalar_lea.vmem %s0, 37
    %v162 = vld [vmem:[%s161] sm:$0x1]
    %163 = vrot.lane.b32.xlu0 %v162, 74
    %v164 = vpop.permute.xlu0 %163
    %vm165 = vcmask 622160
    %166 = vst.msk [vmem:[#allocation0] sm:$0x1] %vm165, %v164
    %s167 = scalar_lea.vmem %s0, 36
    %v168 = vld [vmem:[%s167] sm:$0x1]
    %169 = vrot.lane.b32.xlu0 %v168, 72
    %v170 = vpop.permute.xlu0 %169
    %vm171 = vcmask 605760
    %172 = vst.msk [vmem:[#allocation0] sm:$0x1] %vm171, %v170
    %s173 = scalar_lea.vmem %s0, 35
    %v174 = vld [vmem:[%s173] sm:$0x1]
    %175 = vrot.lane.b32.xlu0 %v174, 70
    %v176 = vpop.permute.xlu0 %175
    %vm177 = vcmask 589360
    %178 = vst.msk [vmem:[#allocation0] sm:$0x1] %vm177, %v176
    %s179 = scalar_lea.vmem %s0, 34
    %v180 = vld [vmem:[%s179] sm:$0x1]
    %181 = vrot.lane.b32.xlu0 %v180, 68
    %v182 = vpop.permute.xlu0 %181
    %vm183 = vcmask 572960
    %184 = vst.msk [vmem:[#allocation0] sm:$0x1] %vm183, %v182
    %s185 = scalar_lea.vmem %s0, 33
    %v186 = vld [vmem:[%s185] sm:$0x1]
    %187 = vrot.lane.b32.xlu0 %v186, 66
    %v188 = vpop.permute.xlu0 %187
    %vm189 = vcmask 556560
    %190 = vst.msk [vmem:[#allocation0] sm:$0x1] %vm189, %v188
    %s191 = scalar_lea.vmem %s0, 32
    %v192 = vld [vmem:[%s191] sm:$0x1]
    %193 = vrot.lane.b32.xlu0 %v192, 64
    %v194 = vpop.permute.xlu0 %193
    %vm195 = vcmask 540160
    %196 = vst.msk [vmem:[#allocation0] sm:$0x1] %vm195, %v194
    %s197 = scalar_lea.vmem %s0, 31
    %v198 = vld [vmem:[%s197] sm:$0x1]
    %199 = vrot.lane.b32.xlu0 %v198, 62
    %v200 = vpop.permute.xlu0 %199
    %vm201 = vcmask 523760
    %202 = vst.msk [vmem:[#allocation0] sm:$0x1] %vm201, %v200
    %s203 = scalar_lea.vmem %s0, 30
    %v204 = vld [vmem:[%s203] sm:$0x1]
    %205 = vrot.lane.b32.xlu0 %v204, 60
    %v206 = vpop.permute.xlu0 %205
    %vm207 = vcmask 507360
    %208 = vst.msk [vmem:[#allocation0] sm:$0x1] %vm207, %v206
    %s209 = scalar_lea.vmem %s0, 29
    %v210 = vld [vmem:[%s209] sm:$0x1]
    %211 = vrot.lane.b32.xlu0 %v210, 58
    %v212 = vpop.permute.xlu0 %211
    %vm213 = vcmask 490960
    %214 = vst.msk [vmem:[#allocation0] sm:$0x1] %vm213, %v212
    %s215 = scalar_lea.vmem %s0, 28
    %v216 = vld [vmem:[%s215] sm:$0x1]
    %217 = vrot.lane.b32.xlu0 %v216, 56
    %v218 = vpop.permute.xlu0 %217
    %vm219 = vcmask 474560
    %220 = vst.msk [vmem:[#allocation0] sm:$0x1] %vm219, %v218
    %s221 = scalar_lea.vmem %s0, 27
    %v222 = vld [vmem:[%s221] sm:$0x1]
    %223 = vrot.lane.b32.xlu0 %v222, 54
    %v224 = vpop.permute.xlu0 %223
    %vm225 = vcmask 458160
    %226 = vst.msk [vmem:[#allocation0] sm:$0x1] %vm225, %v224
    %s227 = scalar_lea.vmem %s0, 26
    %v228 = vld [vmem:[%s227] sm:$0x1]
    %229 = vrot.lane.b32.xlu0 %v228, 52
    %v230 = vpop.permute.xlu0 %229
    %vm231 = vcmask 441760
    %232 = vst.msk [vmem:[#allocation0] sm:$0x1] %vm231, %v230
    %s233 = scalar_lea.vmem %s0, 25
    %v234 = vld [vmem:[%s233] sm:$0x1]
    %235 = vrot.lane.b32.xlu0 %v234, 50
    %v236 = vpop.permute.xlu0 %235
    %vm237 = vcmask 425360
    %238 = vst.msk [vmem:[#allocation0] sm:$0x1] %vm237, %v236
    %s239 = scalar_lea.vmem %s0, 24
    %v240 = vld [vmem:[%s239] sm:$0x1]
    %241 = vrot.lane.b32.xlu0 %v240, 48
    %v242 = vpop.permute.xlu0 %241
    %vm243 = vcmask 408960
    %244 = vst.msk [vmem:[#allocation0] sm:$0x1] %vm243, %v242
    %s245 = scalar_lea.vmem %s0, 23
    %v246 = vld [vmem:[%s245] sm:$0x1]
    %247 = vrot.lane.b32.xlu0 %v246, 46
    %v248 = vpop.permute.xlu0 %247
    %vm249 = vcmask 392560
    %250 = vst.msk [vmem:[#allocation0] sm:$0x1] %vm249, %v248
    %s251 = scalar_lea.vmem %s0, 22
    %v252 = vld [vmem:[%s251] sm:$0x1]
    %253 = vrot.lane.b32.xlu0 %v252, 44
    %v254 = vpop.permute.xlu0 %253
    %vm255 = vcmask 376160
    %256 = vst.msk [vmem:[#allocation0] sm:$0x1] %vm255, %v254
    %s257 = scalar_lea.vmem %s0, 21
    %v258 = vld [vmem:[%s257] sm:$0x1]
    %259 = vrot.lane.b32.xlu0 %v258, 42
    %v260 = vpop.permute.xlu0 %259
    %vm261 = vcmask 359760
    %262 = vst.msk [vmem:[#allocation0] sm:$0x1] %vm261, %v260
    %s263 = scalar_lea.vmem %s0, 20
    %v264 = vld [vmem:[%s263] sm:$0x1]
    %265 = vrot.lane.b32.xlu0 %v264, 40
    %v266 = vpop.permute.xlu0 %265
    %vm267 = vcmask 343360
    %268 = vst.msk [vmem:[#allocation0] sm:$0x1] %vm267, %v266
    %s269 = scalar_lea.vmem %s0, 19
    %v270 = vld [vmem:[%s269] sm:$0x1]
    %271 = vrot.lane.b32.xlu0 %v270, 38
    %v272 = vpop.permute.xlu0 %271
    %vm273 = vcmask 326960
    %274 = vst.msk [vmem:[#allocation0] sm:$0x1] %vm273, %v272
    %s275 = scalar_lea.vmem %s0, 18
    %v276 = vld [vmem:[%s275] sm:$0x1]
    %277 = vrot.lane.b32.xlu0 %v276, 36
    %v278 = vpop.permute.xlu0 %277
    %vm279 = vcmask 310560
    %280 = vst.msk [vmem:[#allocation0] sm:$0x1] %vm279, %v278
    %s281 = scalar_lea.vmem %s0, 17
    %v282 = vld [vmem:[%s281] sm:$0x1]
    %283 = vrot.lane.b32.xlu0 %v282, 34
    %v284 = vpop.permute.xlu0 %283
    %vm285 = vcmask 294160
    %286 = vst.msk [vmem:[#allocation0] sm:$0x1] %vm285, %v284
    %s287 = scalar_lea.vmem %s0, 16
    %v288 = vld [vmem:[%s287] sm:$0x1]
    %289 = vrot.lane.b32.xlu0 %v288, 32
    %v290 = vpop.permute.xlu0 %289
    %vm291 = vcmask 277760
    %292 = vst.msk [vmem:[#allocation0] sm:$0x1] %vm291, %v290
    %s293 = scalar_lea.vmem %s0, 15
    %v294 = vld [vmem:[%s293] sm:$0x1]
    %295 = vrot.lane.b32.xlu0 %v294, 30
    %v296 = vpop.permute.xlu0 %295
    %vm297 = vcmask 261360
    %298 = vst.msk [vmem:[#allocation0] sm:$0x1] %vm297, %v296
    %s299 = scalar_lea.vmem %s0, 14
    %v300 = vld [vmem:[%s299] sm:$0x1]
    %301 = vrot.lane.b32.xlu0 %v300, 28
    %v302 = vpop.permute.xlu0 %301
    %vm303 = vcmask 244960
    %304 = vst.msk [vmem:[#allocation0] sm:$0x1] %vm303, %v302
    %s305 = scalar_lea.vmem %s0, 13
    %v306 = vld [vmem:[%s305] sm:$0x1]
    %307 = vrot.lane.b32.xlu0 %v306, 26
    %v308 = vpop.permute.xlu0 %307
    %vm309 = vcmask 228560
    %310 = vst.msk [vmem:[#allocation0] sm:$0x1] %vm309, %v308
    %s311 = scalar_lea.vmem %s0, 12
    %v312 = vld [vmem:[%s311] sm:$0x1]
    %313 = vrot.lane.b32.xlu0 %v312, 24
    %v314 = vpop.permute.xlu0 %313
    %vm315 = vcmask 212160
    %316 = vst.msk [vmem:[#allocation0] sm:$0x1] %vm315, %v314
    %s317 = scalar_lea.vmem %s0, 11
    %v318 = vld [vmem:[%s317] sm:$0x1]
    %319 = vrot.lane.b32.xlu0 %v318, 22
    %v320 = vpop.permute.xlu0 %319
    %vm321 = vcmask 195760
    %322 = vst.msk [vmem:[#allocation0] sm:$0x1] %vm321, %v320
    %s323 = scalar_lea.vmem %s0, 10
    %v324 = vld [vmem:[%s323] sm:$0x1]
    %325 = vrot.lane.b32.xlu0 %v324, 20
    %v326 = vpop.permute.xlu0 %325
    %vm327 = vcmask 179360
    %328 = vst.msk [vmem:[#allocation0] sm:$0x1] %vm327, %v326
    %s329 = scalar_lea.vmem %s0, 9
    %v330 = vld [vmem:[%s329] sm:$0x1]
    %331 = vrot.lane.b32.xlu0 %v330, 18
    %v332 = vpop.permute.xlu0 %331
    %vm333 = vcmask 162960
    %334 = vst.msk [vmem:[#allocation0] sm:$0x1] %vm333, %v332
    %s335 = scalar_lea.vmem %s0, 8
    %v336 = vld [vmem:[%s335] sm:$0x1]
    %337 = vrot.lane.b32.xlu0 %v336, 16
    %v338 = vpop.permute.xlu0 %337
    %vm339 = vcmask 146560
    %340 = vst.msk [vmem:[#allocation0] sm:$0x1] %vm339, %v338
    %s341 = scalar_lea.vmem %s0, 7
    %v342 = vld [vmem:[%s341] sm:$0x1]
    %343 = vrot.lane.b32.xlu0 %v342, 14
    %v344 = vpop.permute.xlu0 %343
    %vm345 = vcmask 130160
    %346 = vst.msk [vmem:[#allocation0] sm:$0x1] %vm345, %v344
    %s347 = scalar_lea.vmem %s0, 6
    %v348 = vld [vmem:[%s347] sm:$0x1]
    %349 = vrot.lane.b32.xlu0 %v348, 12
    %v350 = vpop.permute.xlu0 %349
    %vm351 = vcmask 113760
    %352 = vst.msk [vmem:[#allocation0] sm:$0x1] %vm351, %v350
    %s353 = scalar_lea.vmem %s0, 5
    %v354 = vld [vmem:[%s353] sm:$0x1]
    %355 = vrot.lane.b32.xlu0 %v354, 10
    %v356 = vpop.permute.xlu0 %355
    %vm357 = vcmask 97360
    %358 = vst.msk [vmem:[#allocation0] sm:$0x1] %vm357, %v356
    %s359 = scalar_lea.vmem %s0, 4
    %v360 = vld [vmem:[%s359] sm:$0x1]
    %361 = vrot.lane.b32.xlu0 %v360, 8
    %v362 = vpop.permute.xlu0 %361
    %vm363 = vcmask 80960
    %364 = vst.msk [vmem:[#allocation0] sm:$0x1] %vm363, %v362
    %s365 = scalar_lea.vmem %s0, 3
    %v366 = vld [vmem:[%s365] sm:$0x1]
    %367 = vrot.lane.b32.xlu0 %v366, 6
    %v368 = vpop.permute.xlu0 %367
    %vm369 = vcmask 64560
    %370 = vst.msk [vmem:[#allocation0] sm:$0x1] %vm369, %v368
    %s371 = scalar_lea.vmem %s0, 2
    %v372 = vld [vmem:[%s371] sm:$0x1]
    %373 = vrot.lane.b32.xlu0 %v372, 4
    %v374 = vpop.permute.xlu0 %373
    %vm375 = vcmask 48160
    %376 = vst.msk [vmem:[#allocation0] sm:$0x1] %vm375, %v374
    %s377 = scalar_lea.vmem %s0, 1
    %v378 = vld [vmem:[%s377] sm:$0x1]
    %379 = vrot.lane.b32.xlu0 %v378, 2
    %v380 = vpop.permute.xlu0 %379
    %vm381 = vcmask 31760
    %382 = vst.msk [vmem:[#allocation0] sm:$0x1] %vm381, %v380
    %s384 = sshllo.u32 0, 1
    %v386 = vld [vmem:[#allocation0] sm:%s384]
    %s387 = sshllo.u32 0, 1
    %388 = vst [vmem:[%s1] sm:%s387] %v386

// kernel: block_forward.1
$region0: #{block_forward.1}
  #allocation0 [shape = 'u32[]', space=smem, size = 0x4, offset = 0x4, fixed_abs, tag = 'smem constant byte address 0x4 - core index']
  #allocation1 [shape = 'u32[144,128]{1,0:T(1,128)}', space=vmem, size = 0x12000, scoped, tag = 'internal scratch']
  %s0 = inlined_call_operand.vmem [shape: f32[16,128], index: 0, kind: input, shape index: {}]
  %s1 = inlined_call_operand.vmem [shape: f32[4,16,16], index: 1, kind: input, shape index: {}]
  %s2 = inlined_call_operand.vmem [shape: f32[1,128], index: 2, kind: input, shape index: {}]
  %s3 = inlined_call_operand.vmem [shape: f32[1,128], index: 3, kind: input, shape index: {}]
  %s4 = inlined_call_operand.vmem [shape: bf16[128,512], index: 4, kind: input, shape index: {}]
  %s5 = inlined_call_operand.vmem [shape: f32[1,512], index: 5, kind: input, shape index: {}]
  %s6 = inlined_call_operand.vmem [shape: f32[1,128], index: 6, kind: input, shape index: {}]
  %s7 = inlined_call_operand.vmem [shape: bf16[128,128], index: 7, kind: input, shape index: {}]
  %s8 = inlined_call_operand.vmem [shape: f32[1,128], index: 8, kind: input, shape index: {}]
  %s9 = inlined_call_operand.vmem [shape: f32[1,128], index: 9, kind: input, shape index: {}]
  %s10 = inlined_call_operand.vmem [shape: f32[1,128], index: 10, kind: input, shape index: {}]
  %s11 = inlined_call_operand.vmem [shape: bf16[128,768], index: 11, kind: input, shape index: {}]
  %s12 = inlined_call_operand.vmem [shape: bf16[384,128], index: 12, kind: input, shape index: {}]
  %s13 = inlined_call_operand.hbm [shape: f32[16,128], index: 13, kind: output, shape index: {}]
  %s14 = sld [smem:[#allocation0]]
  $region62: #{block_forward.1} parent=0
    _
  %s16 = ssub.s32 1, %s14
  %s17 = scalar_select 0, %s16, %s14
  $region1: #{block_forward.1} parent=0
    #allocation2 [shape = 'u8[8192]{0}', space=vmem, size = 0x2000, scoped, tag = 'output window, operand 0, single buffered']
    #allocation3 [shape = 's32[1]{0}', space=sflag, size = 0x4, scoped, tag = 'scoped memory for block_forward.1']
    %18 = vsyncpa [#allocation3], 0
    // Predicated region
    $region2: #{block_forward.1} parent=1 // pred_check
      _
    $region3: #{block_forward.1} parent=1 // pred_check_branch
      %20 = sbr.rel (0) target = $region5
    $region4: #{block_forward.1} parent=1 // pred_region
      _
    $region5: #{block_forward.1} parent=1 // pred_fallthru
      _
    // Predicated region
    $region6: #{block_forward.1} parent=1 // pred_check
      _
    $region7: #{block_forward.1} parent=1 // pred_check_branch
      %22 = sbr.rel (0) target = $region9
    $region8: #{block_forward.1} parent=1 // pred_region
      _
    $region9: #{block_forward.1} parent=1 // pred_fallthru
      _
    // Predicated region
    $region10: #{block_forward.1} parent=1 // pred_check
      _
    $region11: #{block_forward.1} parent=1 // pred_check_branch
      %24 = sbr.rel (0) target = $region13
    $region12: #{block_forward.1} parent=1 // pred_region
      _
    $region13: #{block_forward.1} parent=1 // pred_fallthru
      _
    // Predicated region
    $region14: #{block_forward.1} parent=1 // pred_check
      _
    $region15: #{block_forward.1} parent=1 // pred_check_branch
      %26 = sbr.rel (0) target = $region17
    $region16: #{block_forward.1} parent=1 // pred_region
      _
    $region17: #{block_forward.1} parent=1 // pred_fallthru
      _
    // Predicated region
    $region18: #{block_forward.1} parent=1 // pred_check
      _
    $region19: #{block_forward.1} parent=1 // pred_check_branch
      %28 = sbr.rel (0) target = $region21
    $region20: #{block_forward.1} parent=1 // pred_region
      _
    $region21: #{block_forward.1} parent=1 // pred_fallthru
      _
    // Predicated region
    $region22: #{block_forward.1} parent=1 // pred_check
      _
    $region23: #{block_forward.1} parent=1 // pred_check_branch
      %30 = sbr.rel (0) target = $region25
    $region24: #{block_forward.1} parent=1 // pred_region
      _
    $region25: #{block_forward.1} parent=1 // pred_fallthru
      _
    // Predicated region
    $region26: #{block_forward.1} parent=1 // pred_check
      _
    $region27: #{block_forward.1} parent=1 // pred_check_branch
      %32 = sbr.rel (0) target = $region29
    $region28: #{block_forward.1} parent=1 // pred_region
      _
    $region29: #{block_forward.1} parent=1 // pred_fallthru
      _
    // Predicated region
    $region30: #{block_forward.1} parent=1 // pred_check
      _
    $region31: #{block_forward.1} parent=1 // pred_check_branch
      %34 = sbr.rel (0) target = $region33
    $region32: #{block_forward.1} parent=1 // pred_region
      _
    $region33: #{block_forward.1} parent=1 // pred_fallthru
      _
    // Predicated region
    $region34: #{block_forward.1} parent=1 // pred_check
      _
    $region35: #{block_forward.1} parent=1 // pred_check_branch
      %36 = sbr.rel (0) target = $region37
    $region36: #{block_forward.1} parent=1 // pred_region
      _
    $region37: #{block_forward.1} parent=1 // pred_fallthru
      _
    // Predicated region
    $region38: #{block_forward.1} parent=1 // pred_check
      _
    $region39: #{block_forward.1} parent=1 // pred_check_branch
      %38 = sbr.rel (0) target = $region41
    $region40: #{block_forward.1} parent=1 // pred_region
      _
    $region41: #{block_forward.1} parent=1 // pred_fallthru
      _
    // Predicated region
    $region42: #{block_forward.1} parent=1 // pred_check
      _
    $region43: #{block_forward.1} parent=1 // pred_check_branch
      %40 = sbr.rel (0) target = $region45
    $region44: #{block_forward.1} parent=1 // pred_region
      _
    $region45: #{block_forward.1} parent=1 // pred_fallthru
      _
    // Predicated region
    $region46: #{block_forward.1} parent=1 // pred_check
      _
    $region47: #{block_forward.1} parent=1 // pred_check_branch
      %42 = sbr.rel (0) target = $region49
    $region48: #{block_forward.1} parent=1 // pred_region
      _
    $region49: #{block_forward.1} parent=1 // pred_fallthru
      _
    // Predicated region
    $region50: #{block_forward.1} parent=1 // pred_check
      _
    $region51: #{block_forward.1} parent=1 // pred_check_branch
      %44 = sbr.rel (0) target = $region53
    $region52: #{block_forward.1} parent=1 // pred_region
      _
    $region53: #{block_forward.1} parent=1 // pred_fallthru
      _
    %v46 = vld [vmem:[%s0] sm:$0xff]
    %v47 = vld [vmem:[%s0 + $0x8] sm:$0xff]
    %v48 = vld [vmem:[%s2] sm:$0x1]
    %v49 = vld [vmem:[%s3] sm:$0x1]
    %50 = vadd.xlane.f32.xlu0 %v46
    %v51 = vpop.xlane.xlu0 %50
    %52 = vadd.xlane.f32.xlu0 %v47
    %v53 = vpop.xlane.xlu0 %52
    %v54 = vrcp.pop 128.0
    %v55 = vmul.f32 %v51, %v54
    %v56 = vmul.f32 %v53, %v54
    %v57 = vsub.f32 %v46, %v55
    %v58 = vsub.f32 %v47, %v56
    %v59 = vmul.f32 %v57, %v57
    %v60 = vmul.f32 %v58, %v58
    %61 = vadd.xlane.f32.xlu0 %v59
    %v62 = vpop.xlane.xlu0 %61
    %63 = vadd.xlane.f32.xlu0 %v60
    %v64 = vpop.xlane.xlu0 %63
    %v65 = vmul.f32 %v62, %v54
    %v66 = vmul.f32 %v64, %v54
    %v67 = vadd.f32 %v65, 1e-05
    %v68 = vadd.f32 %v66, 1e-05
    %v69 = vrsqrt.pop %v67
    %v70 = vrsqrt.pop %v68
    %v71 = vmul.f32 %v57, %v69
    %v72 = vmul.f32 %v58, %v70
    %v74 = vlaneseq
    %v75 = vshrl.u32 %v74, 7
    %v76 = vsub.s32 0, %v75
    %v77 = vrot.slane %v48, %v76
    %v79 = vmul.f32 %v71, %v77
    %v80 = vmul.f32 %v72, %v77
    %v82 = vlaneseq
    %v83 = vshrl.u32 %v82, 7
    %v84 = vsub.s32 0, %v83
    %v85 = vrot.slane %v49, %v84
    %v87 = vadd.f32 %v79, %v85
    %v88 = vadd.f32 %v80, %v85
    %v89 = vpack.c.bf16 %v88, %v87
    %v90 = vld [vmem:[%s4] sm:$0xff]
    %v91 = vld [vmem:[%s4 + $0x8] sm:$0xff]
    %v92 = vld [vmem:[%s4 + $0x10] sm:$0xff]
    %v93 = vld [vmem:[%s4 + $0x18] sm:$0xff]
    %v94 = vld [vmem:[%s4 + $0x20] sm:$0xff]
    %v95 = vld [vmem:[%s4 + $0x28] sm:$0xff]
    %v96 = vld [vmem:[%s4 + $0x30] sm:$0xff]
    %v97 = vld [vmem:[%s4 + $0x38] sm:$0xff]
    %v98 = vld [vmem:[%s4 + $0x40] sm:$0xff]
    %v99 = vld [vmem:[%s4 + $0x48] sm:$0xff]
    %v100 = vld [vmem:[%s4 + $0x50] sm:$0xff]
    %v101 = vld [vmem:[%s4 + $0x58] sm:$0xff]
    %v102 = vld [vmem:[%s4 + $0x60] sm:$0xff]
    %v103 = vld [vmem:[%s4 + $0x68] sm:$0xff]
    %v104 = vld [vmem:[%s4 + $0x70] sm:$0xff]
    %v105 = vld [vmem:[%s4 + $0x78] sm:$0xff]
    %v106 = vld [vmem:[%s4 + $0x80] sm:$0xff]
    %v107 = vld [vmem:[%s4 + $0x88] sm:$0xff]
    %v108 = vld [vmem:[%s4 + $0x90] sm:$0xff]
    %v109 = vld [vmem:[%s4 + $0x98] sm:$0xff]
    %v110 = vld [vmem:[%s4 + $0xa0] sm:$0xff]
    %v111 = vld [vmem:[%s4 + $0xa8] sm:$0xff]
    %v112 = vld [vmem:[%s4 + $0xb0] sm:$0xff]
    %v113 = vld [vmem:[%s4 + $0xb8] sm:$0xff]
    %v114 = vld [vmem:[%s4 + $0xc0] sm:$0xff]
    %v115 = vld [vmem:[%s4 + $0xc8] sm:$0xff]
    %v116 = vld [vmem:[%s4 + $0xd0] sm:$0xff]
    %v117 = vld [vmem:[%s4 + $0xd8] sm:$0xff]
    %v118 = vld [vmem:[%s4 + $0xe0] sm:$0xff]
    %v119 = vld [vmem:[%s4 + $0xe8] sm:$0xff]
    %v120 = vld [vmem:[%s4 + $0xf0] sm:$0xff]
    %v121 = vld [vmem:[%s4 + $0xf8] sm:$0xff]
    %v122 = vld [vmem:[%s5] sm:$0xf]
    %v124 = vlaneseq
    %v125 = vshrl.u32 %v124, 7
    %v126 = vsub.s32 0, %v125
    %v127 = vrot.slane %v122, %v126
    %v128 = vlaneseq
    %v129 = vshrl.u32 %v128, 7
    %v130 = vsub.s32 1, %v129
    %v131 = vrot.slane %v122, %v130
    %v132 = vlaneseq
    %v133 = vshrl.u32 %v132, 7
    %v134 = vsub.s32 2, %v133
    %v135 = vrot.slane %v122, %v134
    %v136 = vlaneseq
    %v137 = vshrl.u32 %v136, 7
    %v138 = vsub.s32 3, %v137
    %v139 = vrot.slane %v122, %v138
    %v176 = vunpack.c.l.b16 %v90
    %v177 = vunpack.c.h.b16 %v90
    %v178 = vunpack.c.l.b16 %v91
    %v179 = vunpack.c.h.b16 %v91
    %v180 = vunpack.c.l.b16 %v92
    %v181 = vunpack.c.h.b16 %v92
    %v182 = vunpack.c.l.b16 %v93
    %v183 = vunpack.c.h.b16 %v93
    %v184 = vunpack.c.l.b16 %v94
    %v185 = vunpack.c.h.b16 %v94
    %v186 = vunpack.c.l.b16 %v95
    %v187 = vunpack.c.h.b16 %v95
    %v188 = vunpack.c.l.b16 %v96
    %v189 = vunpack.c.h.b16 %v96
    %v190 = vunpack.c.l.b16 %v97
    %v191 = vunpack.c.h.b16 %v97
    %v192 = vunpack.c.l.b16 %v98
    %v193 = vunpack.c.h.b16 %v98
    %v194 = vunpack.c.l.b16 %v99
    %v195 = vunpack.c.h.b16 %v99
    %v196 = vunpack.c.l.b16 %v100
    %v197 = vunpack.c.h.b16 %v100
    %v198 = vunpack.c.l.b16 %v101
    %v199 = vunpack.c.h.b16 %v101
    %v200 = vunpack.c.l.b16 %v102
    %v201 = vunpack.c.h.b16 %v102
    %v202 = vunpack.c.l.b16 %v103
    %v203 = vunpack.c.h.b16 %v103
    %v204 = vunpack.c.l.b16 %v104
    %v205 = vunpack.c.h.b16 %v104
    %v206 = vunpack.c.l.b16 %v105
    %v207 = vunpack.c.h.b16 %v105
    %v208 = vunpack.c.l.b16 %v106
    %v209 = vunpack.c.h.b16 %v106
    %v210 = vunpack.c.l.b16 %v107
    %v211 = vunpack.c.h.b16 %v107
    %v212 = vunpack.c.l.b16 %v108
    %v213 = vunpack.c.h.b16 %v108
    %v214 = vunpack.c.l.b16 %v109
    %v215 = vunpack.c.h.b16 %v109
    %v216 = vunpack.c.l.b16 %v110
    %v217 = vunpack.c.h.b16 %v110
    %v218 = vunpack.c.l.b16 %v111
    %v219 = vunpack.c.h.b16 %v111
    %v220 = vunpack.c.l.b16 %v112
    %v221 = vunpack.c.h.b16 %v112
    %v222 = vunpack.c.l.b16 %v113
    %v223 = vunpack.c.h.b16 %v113
    %v224 = vunpack.c.l.b16 %v114
    %v225 = vunpack.c.h.b16 %v114
    %v226 = vunpack.c.l.b16 %v115
    %v227 = vunpack.c.h.b16 %v115
    %v228 = vunpack.c.l.b16 %v116
    %v229 = vunpack.c.h.b16 %v116
    %v230 = vunpack.c.l.b16 %v117
    %v231 = vunpack.c.h.b16 %v117
    %v232 = vunpack.c.l.b16 %v118
    %v233 = vunpack.c.h.b16 %v118
    %v234 = vunpack.c.l.b16 %v119
    %v235 = vunpack.c.h.b16 %v119
    %v236 = vunpack.c.l.b16 %v120
    %v237 = vunpack.c.h.b16 %v120
    %v238 = vunpack.c.l.b16 %v121
    %v239 = vunpack.c.h.b16 %v121
    %v240 = vpack.c.b16 %v180, %v176
    %v241 = vpack.c.b16 %v181, %v177
    %v242 = vpack.c.b16 %v182, %v178
    %v243 = vpack.c.b16 %v183, %v179
    %v244 = vpack.c.b16 %v188, %v184
    %v245 = vpack.c.b16 %v189, %v185
    %v246 = vpack.c.b16 %v190, %v186
    %v247 = vpack.c.b16 %v191, %v187
    %v248 = vpack.c.b16 %v196, %v192
    %v249 = vpack.c.b16 %v197, %v193
    %v250 = vpack.c.b16 %v198, %v194
    %v251 = vpack.c.b16 %v199, %v195
    %v252 = vpack.c.b16 %v204, %v200
    %v253 = vpack.c.b16 %v205, %v201
    %v254 = vpack.c.b16 %v206, %v202
    %v255 = vpack.c.b16 %v207, %v203
    %v256 = vpack.c.b16 %v212, %v208
    %v257 = vpack.c.b16 %v213, %v209
    %v258 = vpack.c.b16 %v214, %v210
    %v259 = vpack.c.b16 %v215, %v211
    %v260 = vpack.c.b16 %v220, %v216
    %v261 = vpack.c.b16 %v221, %v217
    %v262 = vpack.c.b16 %v222, %v218
    %v263 = vpack.c.b16 %v223, %v219
    %v264 = vpack.c.b16 %v228, %v224
    %v265 = vpack.c.b16 %v229, %v225
    %v266 = vpack.c.b16 %v230, %v226
    %v267 = vpack.c.b16 %v231, %v227
    %v268 = vpack.c.b16 %v236, %v232
    %v269 = vpack.c.b16 %v237, %v233
    %v270 = vpack.c.b16 %v238, %v234
    %v271 = vpack.c.b16 %v239, %v235
    %304 = vmatprep.subr.bf16.mxu0 %v241
    %305 = vmatpush1.bf16.msra.mxu0 %v240
    %306 = vmatprep.subr.bf16.mxu0 %v245
    %307 = vmatpush1.bf16.msra.mxu0 %v244
    %308 = vmatprep.subr.bf16.mxu0 %v249
    %309 = vmatpush1.bf16.msra.mxu0 %v248
    %310 = vmatprep.subr.bf16.mxu0 %v253
    %311 = vmatpush1.bf16.msra.mxu0 %v252
    %312 = vmatprep.subr.bf16.mxu0 %v257
    %313 = vmatpush1.bf16.msra.mxu0 %v256
    %314 = vmatprep.subr.bf16.mxu0 %v261
    %315 = vmatpush1.bf16.msra.mxu0 %v260
    %316 = vmatprep.subr.bf16.mxu0 %v265
    %317 = vmatpush1.bf16.msra.mxu0 %v264
    %318 = vmatprep.subr.bf16.mxu0 %v269
    %319 = vmatpush1.bf16.msra.mxu0 %v268
    %320 = vmatprep.subr.bf16.mxu0 0
    %321 = vmatpush1.bf16.msra.mxu0 0
    %322 = vmatprep.subr.bf16.mxu0 0
    %323 = vmatpush1.bf16.msra.mxu0 0
    %324 = vmatprep.subr.bf16.mxu0 0
    %325 = vmatpush1.bf16.msra.mxu0 0
    %326 = vmatprep.subr.bf16.mxu0 0
    %327 = vmatpush1.bf16.msra.mxu0 0
    %328 = vmatprep.subr.bf16.mxu0 0
    %329 = vmatpush1.bf16.msra.mxu0 0
    %330 = vmatprep.subr.bf16.mxu0 0
    %331 = vmatpush1.bf16.msra.mxu0 0
    %332 = vmatprep.subr.bf16.mxu0 0
    %333 = vmatpush1.bf16.msra.mxu0 0
    %334 = vmatprep.subr.bf16.mxu0 0
    %335 = vmatpush1.bf16.msra.mxu0 0
    %336 = vmatprep.mubr.bf16.mxu0 0
    %337 = vmatmul.mubr.bf16.gmra.mrb[0].mxu0 %v89
    %v338 = vpop.f32.mrb[0].mxu0
    %v339 = vadd.f32 %v127, %v338
    %v340 = vpop.f32.mrb[0].mxu0
    %v341 = vadd.f32 %v131, %v340
    %v342 = vpop.f32.mrb[0].mxu0
    %v343 = vadd.f32 %v127, %v342
    %v344 = vpop.f32.mrb[0].mxu0
    %v345 = vadd.f32 %v131, %v344
    %346 = vdwg.mxu0
    %347 = vmatprep.subr.bf16.mxu0 %v243
    %348 = vmatpush1.bf16.msra.mxu0 %v242
    %349 = vmatprep.subr.bf16.mxu0 %v247
    %350 = vmatpush1.bf16.msra.mxu0 %v246
    %351 = vmatprep.subr.bf16.mxu0 %v251
    %352 = vmatpush1.bf16.msra.mxu0 %v250
    %353 = vmatprep.subr.bf16.mxu0 %v255
    %354 = vmatpush1.bf16.msra.mxu0 %v254
    %355 = vmatprep.subr.bf16.mxu0 %v259
    %356 = vmatpush1.bf16.msra.mxu0 %v258
    %357 = vmatprep.subr.bf16.mxu0 %v263
    %358 = vmatpush1.bf16.msra.mxu0 %v262
    %359 = vmatprep.subr.bf16.mxu0 %v267
    %360 = vmatpush1.bf16.msra.mxu0 %v266
    %361 = vmatprep.subr.bf16.mxu0 %v271
    %362 = vmatpush1.bf16.msra.mxu0 %v270
    %363 = vmatprep.subr.bf16.mxu0 0
    %364 = vmatpush1.bf16.msra.mxu0 0
    %365 = vmatprep.subr.bf16.mxu0 0
    %366 = vmatpush1.bf16.msra.mxu0 0
    %367 = vmatprep.subr.bf16.mxu0 0
    %368 = vmatpush1.bf16.msra.mxu0 0
    %369 = vmatprep.subr.bf16.mxu0 0
    %370 = vmatpush1.bf16.msra.mxu0 0
    %371 = vmatprep.subr.bf16.mxu0 0
    %372 = vmatpush1.bf16.msra.mxu0 0
    %373 = vmatprep.subr.bf16.mxu0 0
    %374 = vmatpush1.bf16.msra.mxu0 0
    %375 = vmatprep.subr.bf16.mxu0 0
    %376 = vmatpush1.bf16.msra.mxu0 0
    %377 = vmatprep.subr.bf16.mxu0 0
    %378 = vmatpush1.bf16.msra.mxu0 0
    %379 = vmatprep.mubr.bf16.mxu0 0
    %380 = vmatmul.mubr.bf16.gmra.mrb[0].mxu0 %v89
    %v381 = vpop.f32.mrb[0].mxu0
    %v382 = vadd.f32 %v135, %v381
    %v383 = vpop.f32.mrb[0].mxu0
    %v384 = vadd.f32 %v139, %v383
    %v385 = vpop.f32.mrb[0].mxu0
    %v386 = vadd.f32 %v135, %v385
    %v387 = vpop.f32.mrb[0].mxu0
    %v388 = vadd.f32 %v139, %v387
    %389 = vdwg.mxu0
    %392 = vrot.lane.b32.xlu0 %v339, 96
    %v393 = vpop.permute.xlu0 %392
    %394 = vrot.lane.b32.xlu0 %v343, 96
    %v395 = vpop.permute.xlu0 %394
    %396 = vrot.lane.b32.xlu0 %v339, 64
    %v397 = vpop.permute.xlu0 %396
    %398 = vrot.lane.b32.xlu0 %v343, 64
    %v399 = vpop.permute.xlu0 %398
    %400 = vrot.lane.b32.xlu0 %v339, 32
    %v401 = vpop.permute.xlu0 %400
    %402 = vrot.lane.b32.xlu0 %v343, 32
    %v403 = vpop.permute.xlu0 %402
    %406 = vrot.lane.b32.xlu0 %v341, 96
    %v407 = vpop.permute.xlu0 %406
    %408 = vrot.lane.b32.xlu0 %v345, 96
    %v409 = vpop.permute.xlu0 %408
    %410 = vrot.lane.b32.xlu0 %v341, 64
    %v411 = vpop.permute.xlu0 %410
    %412 = vrot.lane.b32.xlu0 %v345, 64
    %v413 = vpop.permute.xlu0 %412
    %414 = vrot.lane.b32.xlu0 %v341, 32
    %v415 = vpop.permute.xlu0 %414
    %416 = vrot.lane.b32.xlu0 %v345, 32
    %v417 = vpop.permute.xlu0 %416
    %420 = vrot.lane.b32.xlu0 %v382, 96
    %v421 = vpop.permute.xlu0 %420
    %422 = vrot.lane.b32.xlu0 %v386, 96
    %v423 = vpop.permute.xlu0 %422
    %426 = vrot.lane.b32.xlu0 %v382, 64
    %v427 = vpop.permute.xlu0 %426
    %428 = vrot.lane.b32.xlu0 %v386, 64
    %v429 = vpop.permute.xlu0 %428
    %432 = vrot.lane.b32.xlu0 %v382, 32
    %v433 = vpop.permute.xlu0 %432
    %434 = vrot.lane.b32.xlu0 %v386, 32
    %v435 = vpop.permute.xlu0 %434
    %vm438 = vcmask 261120
    %v439 = vsel %vm438, %v339, 0
    %v441 = vsel %vm438, %v343, 0
    %v443 = vsel %vm438, %v341, 0
    %v445 = vsel %vm438, %v345, 0
    %447 = vmatprep.subr.mxu0 0.0
    %448 = vmatpush1.xpose.msra.mxu0 %v443
    %449 = vmatprep.subr.mxu0 0.0
    %450 = vmatpush1.xpose.msra.mxu0 %v445
    %451 = vmatprep.subr.mxu0 0.0
    %452 = vmatpush1.xpose.msra.mxu0 0.0
    %453 = vmatprep.subr.mxu0 0.0
    %454 = vmatpush1.xpose.msra.mxu0 0.0
    %455 = vmatprep.subr.mxu0 0.0
    %456 = vmatpush1.xpose.msra.mxu0 0.0
    %457 = vmatprep.subr.mxu0 0.0
    %458 = vmatpush1.xpose.msra.mxu0 0.0
    %459 = vmatprep.subr.mxu0 0.0
    %460 = vmatpush1.xpose.msra.mxu0 0.0
    %461 = vmatprep.subr.mxu0 0.0
    %462 = vmatpush1.xpose.msra.mxu0 0.0
    %463 = vmatprep.subr.mxu0 0.0
    %464 = vmatpush1.xpose.msra.mxu0 0.0
    %465 = vmatprep.subr.mxu0 0.0
    %466 = vmatpush1.xpose.msra.mxu0 0.0
    %467 = vmatprep.subr.mxu0 0.0
    %468 = vmatpush1.xpose.msra.mxu0 0.0
    %469 = vmatprep.subr.mxu0 0.0
    %470 = vmatpush1.xpose.msra.mxu0 0.0
    %471 = vmatprep.subr.mxu0 0.0
    %472 = vmatpush1.xpose.msra.mxu0 0.0
    %473 = vmatprep.subr.mxu0 0.0
    %474 = vmatpush1.xpose.msra.mxu0 0.0
    %475 = vmatprep.subr.mxu0 0.0
    %476 = vmatpush1.xpose.msra.mxu0 0.0
    %477 = vmatprep.subr.mxu0 0.0
    %478 = vmatpush1.xpose.msra.mxu0 0.0
    %479 = vmatprep.subr.mxu0 0.0
    %480 = vmatpush1.xpose.msra.mxu0 0.0
    %481 = vmatprep.subr.mxu0 0.0
    %482 = vmatpush1.xpose.msra.mxu0 0.0
    %483 = vmatprep.subr.mxu0 0.0
    %484 = vmatpush1.xpose.msra.mxu0 0.0
    %485 = vmatprep.subr.mxu0 0.0
    %486 = vmatpush1.xpose.msra.mxu0 0.0
    %487 = vmatprep.subr.mxu0 0.0
    %488 = vmatpush1.xpose.msra.mxu0 0.0
    %489 = vmatprep.subr.mxu0 0.0
    %490 = vmatpush1.xpose.msra.mxu0 0.0
    %491 = vmatprep.subr.mxu0 0.0
    %492 = vmatpush1.xpose.msra.mxu0 0.0
    %493 = vmatprep.subr.mxu0 0.0
    %494 = vmatpush1.xpose.msra.mxu0 0.0
    %495 = vmatprep.subr.mxu0 0.0
    %496 = vmatpush1.xpose.msra.mxu0 0.0
    %497 = vmatprep.subr.mxu0 0.0
    %498 = vmatpush1.xpose.msra.mxu0 0.0
    %499 = vmatprep.subr.mxu0 0.0
    %500 = vmatpush1.xpose.msra.mxu0 0.0
    %501 = vmatprep.subr.mxu0 0.0
    %502 = vmatpush1.xpose.msra.mxu0 0.0
    %503 = vmatprep.subr.mxu0 0.0
    %504 = vmatpush1.xpose.msra.mxu0 0.0
    %505 = vmatprep.subr.mxu0 0.0
    %506 = vmatpush1.xpose.msra.mxu0 0.0
    %507 = vmatprep.subr.mxu0 0.0
    %508 = vmatpush1.xpose.msra.mxu0 0.0
    %509 = vmatprep.subr.mxu0 0.0
    %510 = vmatpush1.xpose.msra.mxu0 0.0
    %511 = vmatprep.mubr.f32.mxu0 0.0
    %512 = vmatmul.mubr.f32.gmra.mrb[0].mxu0 %v439
    %v513 = vpop.f32.mrb[0].mxu0
    %v514 = vadd.f32 0.0, %v513
    %v515 = vpop.f32.mrb[0].mxu0
    %516 = vmatprep.mubr.f32.mxu0 0.0
    %517 = vmatmul.mubr.f32.gmra.mrb[0].mxu0 %v441
    %v518 = vpop.f32.mrb[0].mxu0
    %v519 = vadd.f32 0.0, %v518
    %v520 = vpop.f32.mrb[0].mxu0
    %521 = vdwg.mxu0
    %v522 = vsel %vm438, %v393, 0
    %v524 = vsel %vm438, %v395, 0
    %v526 = vsel %vm438, %v407, 0
    %v528 = vsel %vm438, %v409, 0
    %530 = vmatprep.subr.mxu0 0.0
    %531 = vmatpush1.xpose.msra.mxu0 %v526
    %532 = vmatprep.subr.mxu0 0.0
    %533 = vmatpush1.xpose.msra.mxu0 %v528
    %534 = vmatprep.subr.mxu0 0.0
    %535 = vmatpush1.xpose.msra.mxu0 0.0
    %536 = vmatprep.subr.mxu0 0.0
    %537 = vmatpush1.xpose.msra.mxu0 0.0
    %538 = vmatprep.subr.mxu0 0.0
    %539 = vmatpush1.xpose.msra.mxu0 0.0
    %540 = vmatprep.subr.mxu0 0.0
    %541 = vmatpush1.xpose.msra.mxu0 0.0
    %542 = vmatprep.subr.mxu0 0.0
    %543 = vmatpush1.xpose.msra.mxu0 0.0
    %544 = vmatprep.subr.mxu0 0.0
    %545 = vmatpush1.xpose.msra.mxu0 0.0
    %546 = vmatprep.subr.mxu0 0.0
    %547 = vmatpush1.xpose.msra.mxu0 0.0
    %548 = vmatprep.subr.mxu0 0.0
    %549 = vmatpush1.xpose.msra.mxu0 0.0
    %550 = vmatprep.subr.mxu0 0.0
    %551 = vmatpush1.xpose.msra.mxu0 0.0
    %552 = vmatprep.subr.mxu0 0.0
    %553 = vmatpush1.xpose.msra.mxu0 0.0
    %554 = vmatprep.subr.mxu0 0.0
    %555 = vmatpush1.xpose.msra.mxu0 0.0
    %556 = vmatprep.subr.mxu0 0.0
    %557 = vmatpush1.xpose.msra.mxu0 0.0
    %558 = vmatprep.subr.mxu0 0.0
    %559 = vmatpush1.xpose.msra.mxu0 0.0
    %560 = vmatprep.subr.mxu0 0.0
    %561 = vmatpush1.xpose.msra.mxu0 0.0
    %562 = vmatprep.subr.mxu0 0.0
    %563 = vmatpush1.xpose.msra.mxu0 0.0
    %564 = vmatprep.subr.mxu0 0.0
    %565 = vmatpush1.xpose.msra.mxu0 0.0
    %566 = vmatprep.subr.mxu0 0.0
    %567 = vmatpush1.xpose.msra.mxu0 0.0
    %568 = vmatprep.subr.mxu0 0.0
    %569 = vmatpush1.xpose.msra.mxu0 0.0
    %570 = vmatprep.subr.mxu0 0.0
    %571 = vmatpush1.xpose.msra.mxu0 0.0
    %572 = vmatprep.subr.mxu0 0.0
    %573 = vmatpush1.xpose.msra.mxu0 0.0
    %574 = vmatprep.subr.mxu0 0.0
    %575 = vmatpush1.xpose.msra.mxu0 0.0
    %576 = vmatprep.subr.mxu0 0.0
    %577 = vmatpush1.xpose.msra.mxu0 0.0
    %578 = vmatprep.subr.mxu0 0.0
    %579 = vmatpush1.xpose.msra.mxu0 0.0
    %580 = vmatprep.subr.mxu0 0.0
    %581 = vmatpush1.xpose.msra.mxu0 0.0
    %582 = vmatprep.subr.mxu0 0.0
    %583 = vmatpush1.xpose.msra.mxu0 0.0
    %584 = vmatprep.subr.mxu0 0.0
    %585 = vmatpush1.xpose.msra.mxu0 0.0
    %586 = vmatprep.subr.mxu0 0.0
    %587 = vmatpush1.xpose.msra.mxu0 0.0
    %588 = vmatprep.subr.mxu0 0.0
    %589 = vmatpush1.xpose.msra.mxu0 0.0
    %590 = vmatprep.subr.mxu0 0.0
    %591 = vmatpush1.xpose.msra.mxu0 0.0
    %592 = vmatprep.subr.mxu0 0.0
    %593 = vmatpush1.xpose.msra.mxu0 0.0
    %594 = vmatprep.mubr.f32.mxu0 0.0
    %595 = vmatmul.mubr.f32.gmra.mrb[0].mxu0 %v522
    %v596 = vpop.f32.mrb[0].mxu0
    %v597 = vadd.f32 0.0, %v596
    %v598 = vpop.f32.mrb[0].mxu0
    %599 = vmatprep.mubr.f32.mxu0 0.0
    %600 = vmatmul.mubr.f32.gmra.mrb[0].mxu0 %v524
    %v601 = vpop.f32.mrb[0].mxu0
    %v602 = vadd.f32 0.0, %v601
    %v603 = vpop.f32.mrb[0].mxu0
    %604 = vdwg.mxu0
    %v605 = vsel %vm438, %v397, 0
    %v607 = vsel %vm438, %v399, 0
    %v609 = vsel %vm438, %v411, 0
    %v611 = vsel %vm438, %v413, 0
    %613 = vmatprep.subr.mxu0 0.0
    %614 = vmatpush1.xpose.msra.mxu0 %v609
    %615 = vmatprep.subr.mxu0 0.0
    %616 = vmatpush1.xpose.msra.mxu0 %v611
    %617 = vmatprep.subr.mxu0 0.0
    %618 = vmatpush1.xpose.msra.mxu0 0.0
    %619 = vmatprep.subr.mxu0 0.0
    %620 = vmatpush1.xpose.msra.mxu0 0.0
    %621 = vmatprep.subr.mxu0 0.0
    %622 = vmatpush1.xpose.msra.mxu0 0.0
    %623 = vmatprep.subr.mxu0 0.0
    %624 = vmatpush1.xpose.msra.mxu0 0.0
    %625 = vmatprep.subr.mxu0 0.0
    %626 = vmatpush1.xpose.msra.mxu0 0.0
    %627 = vmatprep.subr.mxu0 0.0
    %628 = vmatpush1.xpose.msra.mxu0 0.0
    %629 = vmatprep.subr.mxu0 0.0
    %630 = vmatpush1.xpose.msra.mxu0 0.0
    %631 = vmatprep.subr.mxu0 0.0
    %632 = vmatpush1.xpose.msra.mxu0 0.0
    %633 = vmatprep.subr.mxu0 0.0
    %634 = vmatpush1.xpose.msra.mxu0 0.0
    %635 = vmatprep.subr.mxu0 0.0
    %636 = vmatpush1.xpose.msra.mxu0 0.0
    %637 = vmatprep.subr.mxu0 0.0
    %638 = vmatpush1.xpose.msra.mxu0 0.0
    %639 = vmatprep.subr.mxu0 0.0
    %640 = vmatpush1.xpose.msra.mxu0 0.0
    %641 = vmatprep.subr.mxu0 0.0
    %642 = vmatpush1.xpose.msra.mxu0 0.0
    %643 = vmatprep.subr.mxu0 0.0
    %644 = vmatpush1.xpose.msra.mxu0 0.0
    %645 = vmatprep.subr.mxu0 0.0
    %646 = vmatpush1.xpose.msra.mxu0 0.0
    %647 = vmatprep.subr.mxu0 0.0
    %648 = vmatpush1.xpose.msra.mxu0 0.0
    %649 = vmatprep.subr.mxu0 0.0
    %650 = vmatpush1.xpose.msra.mxu0 0.0
    %651 = vmatprep.subr.mxu0 0.0
    %652 = vmatpush1.xpose.msra.mxu0 0.0
    %653 = vmatprep.subr.mxu0 0.0
    %654 = vmatpush1.xpose.msra.mxu0 0.0
    %655 = vmatprep.subr.mxu0 0.0
    %656 = vmatpush1.xpose.msra.mxu0 0.0
    %657 = vmatprep.subr.mxu0 0.0
    %658 = vmatpush1.xpose.msra.mxu0 0.0
    %659 = vmatprep.subr.mxu0 0.0
    %660 = vmatpush1.xpose.msra.mxu0 0.0
    %661 = vmatprep.subr.mxu0 0.0
    %662 = vmatpush1.xpose.msra.mxu0 0.0
    %663 = vmatprep.subr.mxu0 0.0
    %664 = vmatpush1.xpose.msra.mxu0 0.0
    %665 = vmatprep.subr.mxu0 0.0
    %666 = vmatpush1.xpose.msra.mxu0 0.0
    %667 = vmatprep.subr.mxu0 0.0
    %668 = vmatpush1.xpose.msra.mxu0 0.0
    %669 = vmatprep.subr.mxu0 0.0
    %670 = vmatpush1.xpose.msra.mxu0 0.0
    %671 = vmatprep.subr.mxu0 0.0
    %672 = vmatpush1.xpose.msra.mxu0 0.0
    %673 = vmatprep.subr.mxu0 0.0
    %674 = vmatpush1.xpose.msra.mxu0 0.0
    %675 = vmatprep.subr.mxu0 0.0
    %676 = vmatpush1.xpose.msra.mxu0 0.0
    %677 = vmatprep.mubr.f32.mxu0 0.0
    %678 = vmatmul.mubr.f32.gmra.mrb[0].mxu0 %v605
    %v679 = vpop.f32.mrb[0].mxu0
    %v680 = vadd.f32 0.0, %v679
    %v681 = vpop.f32.mrb[0].mxu0
    %682 = vmatprep.mubr.f32.mxu0 0.0
    %683 = vmatmul.mubr.f32.gmra.mrb[0].mxu0 %v607
    %v684 = vpop.f32.mrb[0].mxu0
    %v685 = vadd.f32 0.0, %v684
    %v686 = vpop.f32.mrb[0].mxu0
    %687 = vdwg.mxu0
    %v688 = vsel %vm438, %v401, 0
    %v690 = vsel %vm438, %v403, 0
    %v692 = vsel %vm438, %v415, 0
    %v694 = vsel %vm438, %v417, 0
    %696 = vmatprep.subr.mxu0 0.0
    %697 = vmatpush1.xpose.msra.mxu0 %v692
    %698 = vmatprep.subr.mxu0 0.0
    %699 = vmatpush1.xpose.msra.mxu0 %v694
    %700 = vmatprep.subr.mxu0 0.0
    %701 = vmatpush1.xpose.msra.mxu0 0.0
    %702 = vmatprep.subr.mxu0 0.0
    %703 = vmatpush1.xpose.msra.mxu0 0.0
    %704 = vmatprep.subr.mxu0 0.0
    %705 = vmatpush1.xpose.msra.mxu0 0.0
    %706 = vmatprep.subr.mxu0 0.0
    %707 = vmatpush1.xpose.msra.mxu0 0.0
    %708 = vmatprep.subr.mxu0 0.0
    %709 = vmatpush1.xpose.msra.mxu0 0.0
    %710 = vmatprep.subr.mxu0 0.0
    %711 = vmatpush1.xpose.msra.mxu0 0.0
    %712 = vmatprep.subr.mxu0 0.0
    %713 = vmatpush1.xpose.msra.mxu0 0.0
    %714 = vmatprep.subr.mxu0 0.0
    %715 = vmatpush1.xpose.msra.mxu0 0.0
    %716 = vmatprep.subr.mxu0 0.0
    %717 = vmatpush1.xpose.msra.mxu0 0.0
    %718 = vmatprep.subr.mxu0 0.0
    %719 = vmatpush1.xpose.msra.mxu0 0.0
    %720 = vmatprep.subr.mxu0 0.0
    %721 = vmatpush1.xpose.msra.mxu0 0.0
    %722 = vmatprep.subr.mxu0 0.0
    %723 = vmatpush1.xpose.msra.mxu0 0.0
    %724 = vmatprep.subr.mxu0 0.0
    %725 = vmatpush1.xpose.msra.mxu0 0.0
    %726 = vmatprep.subr.mxu0 0.0
    %727 = vmatpush1.xpose.msra.mxu0 0.0
    %728 = vmatprep.subr.mxu0 0.0
    %729 = vmatpush1.xpose.msra.mxu0 0.0
    %730 = vmatprep.subr.mxu0 0.0
    %731 = vmatpush1.xpose.msra.mxu0 0.0
    %732 = vmatprep.subr.mxu0 0.0
    %733 = vmatpush1.xpose.msra.mxu0 0.0
    %734 = vmatprep.subr.mxu0 0.0
    %735 = vmatpush1.xpose.msra.mxu0 0.0
    %736 = vmatprep.subr.mxu0 0.0
    %737 = vmatpush1.xpose.msra.mxu0 0.0
    %738 = vmatprep.subr.mxu0 0.0
    %739 = vmatpush1.xpose.msra.mxu0 0.0
    %740 = vmatprep.subr.mxu0 0.0
    %741 = vmatpush1.xpose.msra.mxu0 0.0
    %742 = vmatprep.subr.mxu0 0.0
    %743 = vmatpush1.xpose.msra.mxu0 0.0
    %744 = vmatprep.subr.mxu0 0.0
    %745 = vmatpush1.xpose.msra.mxu0 0.0
    %746 = vmatprep.subr.mxu0 0.0
    %747 = vmatpush1.xpose.msra.mxu0 0.0
    %748 = vmatprep.subr.mxu0 0.0
    %749 = vmatpush1.xpose.msra.mxu0 0.0
    %750 = vmatprep.subr.mxu0 0.0
    %751 = vmatpush1.xpose.msra.mxu0 0.0
    %752 = vmatprep.subr.mxu0 0.0
    %753 = vmatpush1.xpose.msra.mxu0 0.0
    %754 = vmatprep.subr.mxu0 0.0
    %755 = vmatpush1.xpose.msra.mxu0 0.0
    %756 = vmatprep.subr.mxu0 0.0
    %757 = vmatpush1.xpose.msra.mxu0 0.0
    %758 = vmatprep.subr.mxu0 0.0
    %759 = vmatpush1.xpose.msra.mxu0 0.0
    %760 = vmatprep.mubr.f32.mxu0 0.0
    %761 = vmatmul.mubr.f32.gmra.mrb[0].mxu0 %v688
    %v762 = vpop.f32.mrb[0].mxu0
    %v763 = vadd.f32 0.0, %v762
    %v764 = vpop.f32.mrb[0].mxu0
    %765 = vmatprep.mubr.f32.mxu0 0.0
    %766 = vmatmul.mubr.f32.gmra.mrb[0].mxu0 %v690
    %v767 = vpop.f32.mrb[0].mxu0
    %v768 = vadd.f32 0.0, %v767
    %v769 = vpop.f32.mrb[0].mxu0
    %770 = vdwg.mxu0
    %v771 = vand.u32 2147483647, %v514
    %v772 = vand.u32 2147483647, %v519
    %v773 = vand.u32 2147483647, %v597
    %v774 = vand.u32 2147483647, %v602
    %v775 = vand.u32 2147483647, %v680
    %v776 = vand.u32 2147483647, %v685
    %v777 = vand.u32 2147483647, %v763
    %v778 = vand.u32 2147483647, %v768
    %vm779 = vcmask 130048
    %v780 = vsel %vm779, %v771, 0.0
    %781 = vadd.xlane.f32.xlu0 %v780
    %v782 = vpop.xlane.xlu0 %781
    %v783 = vsel %vm779, %v772, 0.0
    %784 = vadd.xlane.f32.xlu0 %v783
    %v785 = vpop.xlane.xlu0 %784
    %v786 = vsel %vm779, %v773, 0.0
    %787 = vadd.xlane.f32.xlu0 %v786
    %v788 = vpop.xlane.xlu0 %787
    %v789 = vsel %vm779, %v774, 0.0
    %790 = vadd.xlane.f32.xlu0 %v789
    %v791 = vpop.xlane.xlu0 %790
    %v792 = vsel %vm779, %v775, 0.0
    %793 = vadd.xlane.f32.xlu0 %v792
    %v794 = vpop.xlane.xlu0 %793
    %v795 = vsel %vm779, %v776, 0.0
    %796 = vadd.xlane.f32.xlu0 %v795
    %v797 = vpop.xlane.xlu0 %796
    %v798 = vsel %vm779, %v777, 0.0
    %799 = vadd.xlane.f32.xlu0 %v798
    %v800 = vpop.xlane.xlu0 %799
    %v801 = vsel %vm779, %v778, 0.0
    %802 = vadd.xlane.f32.xlu0 %v801
    %v803 = vpop.xlane.xlu0 %802
    %v804 = vmax.f32 %v782, 1.0
    %v805 = vmax.f32 %v785, 1.0
    %v806 = vmax.f32 %v788, 1.0
    %v807 = vmax.f32 %v791, 1.0
    %v808 = vmax.f32 %v794, 1.0
    %v809 = vmax.f32 %v797, 1.0
    %v810 = vmax.f32 %v800, 1.0
    %v811 = vmax.f32 %v803, 1.0
    %v812 = vmin.f32 %v804, 50000.0
    %v813 = vmin.f32 %v805, 50000.0
    %v814 = vmin.f32 %v806, 50000.0
    %v815 = vmin.f32 %v807, 50000.0
    %v816 = vmin.f32 %v808, 50000.0
    %v817 = vmin.f32 %v809, 50000.0
    %v818 = vmin.f32 %v810, 50000.0
    %v819 = vmin.f32 %v811, 50000.0
    %v820 = vrcp.pop %v812
    %v821 = vrcp.pop %v813
    %v822 = vrcp.pop %v814
    %v823 = vrcp.pop %v815
    %v824 = vrcp.pop %v816
    %v825 = vrcp.pop %v817
    %v826 = vrcp.pop %v818
    %v827 = vrcp.pop %v819
    %v828 = vmul.f32 %v514, %v820
    %v829 = vmul.f32 %v519, %v821
    %v830 = vmul.f32 %v597, %v822
    %v831 = vmul.f32 %v602, %v823
    %v832 = vmul.f32 %v680, %v824
    %v833 = vmul.f32 %v685, %v825
    %v834 = vmul.f32 %v763, %v826
    %v835 = vmul.f32 %v768, %v827
    %v836 = vld [vmem:[%s1] sm:$0xff]
    %v837 = vld [vmem:[%s1 + $0x8] sm:$0xff]
    %v838 = vld [vmem:[%s1 + $0x10] sm:$0xff]
    %v839 = vld [vmem:[%s1 + $0x18] sm:$0xff]
    %v840 = vld [vmem:[%s1 + $0x20] sm:$0xff]
    %v841 = vld [vmem:[%s1 + $0x28] sm:$0xff]
    %v842 = vld [vmem:[%s1 + $0x30] sm:$0xff]
    %v843 = vld [vmem:[%s1 + $0x38] sm:$0xff]
    %v844 = vadd.f32 %v828, %v836
    %v845 = vadd.f32 %v829, %v837
    %v846 = vadd.f32 %v830, %v838
    %v847 = vadd.f32 %v831, %v839
    %v848 = vadd.f32 %v832, %v840
    %v849 = vadd.f32 %v833, %v841
    %v850 = vadd.f32 %v834, %v842
    %v851 = vadd.f32 %v835, %v843
    %v853 = vsel %vm779, %v844, 0
    %v856 = vsel %vm779, %v845, 0
    %858 = vmatprep.subr.mxu0 0.0
    %859 = vmatpush1.msra.mxu0 %v382
    %860 = vmatprep.subr.mxu0 0.0
    %861 = vmatpush1.msra.mxu0 %v386
    %862 = vmatprep.subr.mxu0 0.0
    %863 = vmatpush1.msra.mxu0 0.0
    %864 = vmatprep.subr.mxu0 0.0
    %865 = vmatpush1.msra.mxu0 0.0
    %866 = vmatprep.subr.mxu0 0.0
    %867 = vmatpush1.msra.mxu0 0.0
    %868 = vmatprep.subr.mxu0 0.0
    %869 = vmatpush1.msra.mxu0 0.0
    %870 = vmatprep.subr.mxu0 0.0
    %871 = vmatpush1.msra.mxu0 0.0
    %872 = vmatprep.subr.mxu0 0.0
    %873 = vmatpush1.msra.mxu0 0.0
    %874 = vmatprep.subr.mxu0 0.0
    %875 = vmatpush1.msra.mxu0 0.0
    %876 = vmatprep.subr.mxu0 0.0
    %877 = vmatpush1.msra.mxu0 0.0
    %878 = vmatprep.subr.mxu0 0.0
    %879 = vmatpush1.msra.mxu0 0.0
    %880 = vmatprep.subr.mxu0 0.0
    %881 = vmatpush1.msra.mxu0 0.0
    %882 = vmatprep.subr.mxu0 0.0
    %883 = vmatpush1.msra.mxu0 0.0
    %884 = vmatprep.subr.mxu0 0.0
    %885 = vmatpush1.msra.mxu0 0.0
    %886 = vmatprep.subr.mxu0 0.0
    %887 = vmatpush1.msra.mxu0 0.0
    %888 = vmatprep.subr.mxu0 0.0
    %889 = vmatpush1.msra.mxu0 0.0
    %890 = vmatprep.subr.mxu0 0.0
    %891 = vmatpush1.msra.mxu0 0.0
    %892 = vmatprep.subr.mxu0 0.0
    %893 = vmatpush1.msra.mxu0 0.0
    %894 = vmatprep.subr.mxu0 0.0
    %895 = vmatpush1.msra.mxu0 0.0
    %896 = vmatprep.subr.mxu0 0.0
    %897 = vmatpush1.msra.mxu0 0.0
    %898 = vmatprep.subr.mxu0 0.0
    %899 = vmatpush1.msra.mxu0 0.0
    %900 = vmatprep.subr.mxu0 0.0
    %901 = vmatpush1.msra.mxu0 0.0
    %902 = vmatprep.subr.mxu0 0.0
    %903 = vmatpush1.msra.mxu0 0.0
    %904 = vmatprep.subr.mxu0 0.0
    %905 = vmatpush1.msra.mxu0 0.0
    %906 = vmatprep.subr.mxu0 0.0
    %907 = vmatpush1.msra.mxu0 0.0
    %908 = vmatprep.subr.mxu0 0.0
    %909 = vmatpush1.msra.mxu0 0.0
    %910 = vmatprep.subr.mxu0 0.0
    %911 = vmatpush1.msra.mxu0 0.0
    %912 = vmatprep.subr.mxu0 0.0
    %913 = vmatpush1.msra.mxu0 0.0
    %914 = vmatprep.subr.mxu0 0.0
    %915 = vmatpush1.msra.mxu0 0.0
    %916 = vmatprep.subr.mxu0 0.0
    %917 = vmatpush1.msra.mxu0 0.0
    %918 = vmatprep.subr.mxu0 0.0
    %919 = vmatpush1.msra.mxu0 0.0
    %920 = vmatprep.subr.mxu0 0.0
    %921 = vmatpush1.msra.mxu0 0.0
    %922 = vmatprep.mubr.f32.mxu0 0.0
    %923 = vmatmul.mubr.f32.gmra.mrb[0].mxu0 %v853
    %v924 = vpop.f32.mrb[0].mxu0
    %v925 = vadd.f32 0.0, %v924
    %v926 = vpop.f32.mrb[0].mxu0
    %927 = vmatprep.mubr.f32.mxu0 0.0
    %928 = vmatmul.mubr.f32.gmra.mrb[0].mxu0 %v856
    %v929 = vpop.f32.mrb[0].mxu0
    %v930 = vadd.f32 0.0, %v929
    %v931 = vpop.f32.mrb[0].mxu0
    %932 = vdwg.mxu0
    %v934 = vsel %vm779, %v846, 0
    %v937 = vsel %vm779, %v847, 0
    %939 = vmatprep.subr.mxu0 0.0
    %940 = vmatpush1.msra.mxu0 %v421
    %941 = vmatprep.subr.mxu0 0.0
    %942 = vmatpush1.msra.mxu0 %v423
    %943 = vmatprep.subr.mxu0 0.0
    %944 = vmatpush1.msra.mxu0 0.0
    %945 = vmatprep.subr.mxu0 0.0
    %946 = vmatpush1.msra.mxu0 0.0
    %947 = vmatprep.subr.mxu0 0.0
    %948 = vmatpush1.msra.mxu0 0.0
    %949 = vmatprep.subr.mxu0 0.0
    %950 = vmatpush1.msra.mxu0 0.0
    %951 = vmatprep.subr.mxu0 0.0
    %952 = vmatpush1.msra.mxu0 0.0
    %953 = vmatprep.subr.mxu0 0.0
    %954 = vmatpush1.msra.mxu0 0.0
    %955 = vmatprep.subr.mxu0 0.0
    %956 = vmatpush1.msra.mxu0 0.0
    %957 = vmatprep.subr.mxu0 0.0
    %958 = vmatpush1.msra.mxu0 0.0
    %959 = vmatprep.subr.mxu0 0.0
    %960 = vmatpush1.msra.mxu0 0.0
    %961 = vmatprep.subr.mxu0 0.0
    %962 = vmatpush1.msra.mxu0 0.0
    %963 = vmatprep.subr.mxu0 0.0
    %964 = vmatpush1.msra.mxu0 0.0
    %965 = vmatprep.subr.mxu0 0.0
    %966 = vmatpush1.msra.mxu0 0.0
    %967 = vmatprep.subr.mxu0 0.0
    %968 = vmatpush1.msra.mxu0 0.0
    %969 = vmatprep.subr.mxu0 0.0
    %970 = vmatpush1.msra.mxu0 0.0
    %971 = vmatprep.subr.mxu0 0.0
    %972 = vmatpush1.msra.mxu0 0.0
    %973 = vmatprep.subr.mxu0 0.0
    %974 = vmatpush1.msra.mxu0 0.0
    %975 = vmatprep.subr.mxu0 0.0
    %976 = vmatpush1.msra.mxu0 0.0
    %977 = vmatprep.subr.mxu0 0.0
    %978 = vmatpush1.msra.mxu0 0.0
    %979 = vmatprep.subr.mxu0 0.0
    %980 = vmatpush1.msra.mxu0 0.0
    %981 = vmatprep.subr.mxu0 0.0
    %982 = vmatpush1.msra.mxu0 0.0
    %983 = vmatprep.subr.mxu0 0.0
    %984 = vmatpush1.msra.mxu0 0.0
    %985 = vmatprep.subr.mxu0 0.0
    %986 = vmatpush1.msra.mxu0 0.0
    %987 = vmatprep.subr.mxu0 0.0
    %988 = vmatpush1.msra.mxu0 0.0
    %989 = vmatprep.subr.mxu0 0.0
    %990 = vmatpush1.msra.mxu0 0.0
    %991 = vmatprep.subr.mxu0 0.0
    %992 = vmatpush1.msra.mxu0 0.0
    %993 = vmatprep.subr.mxu0 0.0
    %994 = vmatpush1.msra.mxu0 0.0
    %995 = vmatprep.subr.mxu0 0.0
    %996 = vmatpush1.msra.mxu0 0.0
    %997 = vmatprep.subr.mxu0 0.0
    %998 = vmatpush1.msra.mxu0 0.0
    %999 = vmatprep.subr.mxu0 0.0
    %1000 = vmatpush1.msra.mxu0 0.0
    %1001 = vmatprep.subr.mxu0 0.0
    %1002 = vmatpush1.msra.mxu0 0.0
    %1003 = vmatprep.mubr.f32.mxu0 0.0
    %1004 = vmatmul.mubr.f32.gmra.mrb[0].mxu0 %v934
    %v1005 = vpop.f32.mrb[0].mxu0
    %v1006 = vadd.f32 0.0, %v1005
    %v1007 = vpop.f32.mrb[0].mxu0
    %1008 = vmatprep.mubr.f32.mxu0 0.0
    %1009 = vmatmul.mubr.f32.gmra.mrb[0].mxu0 %v937
    %v1010 = vpop.f32.mrb[0].mxu0
    %v1011 = vadd.f32 0.0, %v1010
    %v1012 = vpop.f32.mrb[0].mxu0
    %1013 = vdwg.mxu0
    %v1015 = vsel %vm779, %v848, 0
    %v1018 = vsel %vm779, %v849, 0
    %1020 = vmatprep.subr.mxu0 0.0
    %1021 = vmatpush1.msra.mxu0 %v427
    %1022 = vmatprep.subr.mxu0 0.0
    %1023 = vmatpush1.msra.mxu0 %v429
    %1024 = vmatprep.subr.mxu0 0.0
    %1025 = vmatpush1.msra.mxu0 0.0
    %1026 = vmatprep.subr.mxu0 0.0
    %1027 = vmatpush1.msra.mxu0 0.0
    %1028 = vmatprep.subr.mxu0 0.0
    %1029 = vmatpush1.msra.mxu0 0.0
    %1030 = vmatprep.subr.mxu0 0.0
    %1031 = vmatpush1.msra.mxu0 0.0
    %1032 = vmatprep.subr.mxu0 0.0
    %1033 = vmatpush1.msra.mxu0 0.0
    %1034 = vmatprep.subr.mxu0 0.0
    %1035 = vmatpush1.msra.mxu0 0.0
    %1036 = vmatprep.subr.mxu0 0.0
    %1037 = vmatpush1.msra.mxu0 0.0
    %1038 = vmatprep.subr.mxu0 0.0
    %1039 = vmatpush1.msra.mxu0 0.0
    %1040 = vmatprep.subr.mxu0 0.0
    %1041 = vmatpush1.msra.mxu0 0.0
    %1042 = vmatprep.subr.mxu0 0.0
    %1043 = vmatpush1.msra.mxu0 0.0
    %1044 = vmatprep.subr.mxu0 0.0
    %1045 = vmatpush1.msra.mxu0 0.0
    %1046 = vmatprep.subr.mxu0 0.0
    %1047 = vmatpush1.msra.mxu0 0.0
    %1048 = vmatprep.subr.mxu0 0.0
    %1049 = vmatpush1.msra.mxu0 0.0
    %1050 = vmatprep.subr.mxu0 0.0
    %1051 = vmatpush1.msra.mxu0 0.0
    %1052 = vmatprep.subr.mxu0 0.0
    %1053 = vmatpush1.msra.mxu0 0.0
    %1054 = vmatprep.subr.mxu0 0.0
    %1055 = vmatpush1.msra.mxu0 0.0
    %1056 = vmatprep.subr.mxu0 0.0
    %1057 = vmatpush1.msra.mxu0 0.0
    %1058 = vmatprep.subr.mxu0 0.0
    %1059 = vmatpush1.msra.mxu0 0.0
    %1060 = vmatprep.subr.mxu0 0.0
    %1061 = vmatpush1.msra.mxu0 0.0
    %1062 = vmatprep.subr.mxu0 0.0
    %1063 = vmatpush1.msra.mxu0 0.0
    %1064 = vmatprep.subr.mxu0 0.0
    %1065 = vmatpush1.msra.mxu0 0.0
    %1066 = vmatprep.subr.mxu0 0.0
    %1067 = vmatpush1.msra.mxu0 0.0
    %1068 = vmatprep.subr.mxu0 0.0
    %1069 = vmatpush1.msra.mxu0 0.0
    %1070 = vmatprep.subr.mxu0 0.0
    %1071 = vmatpush1.msra.mxu0 0.0
    %1072 = vmatprep.subr.mxu0 0.0
    %1073 = vmatpush1.msra.mxu0 0.0
    %1074 = vmatprep.subr.mxu0 0.0
    %1075 = vmatpush1.msra.mxu0 0.0
    %1076 = vmatprep.subr.mxu0 0.0
    %1077 = vmatpush1.msra.mxu0 0.0
    %1078 = vmatprep.subr.mxu0 0.0
    %1079 = vmatpush1.msra.mxu0 0.0
    %1080 = vmatprep.subr.mxu0 0.0
    %1081 = vmatpush1.msra.mxu0 0.0
    %1082 = vmatprep.subr.mxu0 0.0
    %1083 = vmatpush1.msra.mxu0 0.0
    %1084 = vmatprep.mubr.f32.mxu0 0.0
    %1085 = vmatmul.mubr.f32.gmra.mrb[0].mxu0 %v1015
    %v1086 = vpop.f32.mrb[0].mxu0
    %v1087 = vadd.f32 0.0, %v1086
    %v1088 = vpop.f32.mrb[0].mxu0
    %1089 = vmatprep.mubr.f32.mxu0 0.0
    %1090 = vmatmul.mubr.f32.gmra.mrb[0].mxu0 %v1018
    %v1091 = vpop.f32.mrb[0].mxu0
    %v1092 = vadd.f32 0.0, %v1091
    %v1093 = vpop.f32.mrb[0].mxu0
    %1094 = vdwg.mxu0
    %v1096 = vsel %vm779, %v850, 0
    %v1099 = vsel %vm779, %v851, 0
    %1101 = vmatprep.subr.mxu0 0.0
    %1102 = vmatpush1.msra.mxu0 %v433
    %1103 = vmatprep.subr.mxu0 0.0
    %1104 = vmatpush1.msra.mxu0 %v435
    %1105 = vmatprep.subr.mxu0 0.0
    %1106 = vmatpush1.msra.mxu0 0.0
    %1107 = vmatprep.subr.mxu0 0.0
    %1108 = vmatpush1.msra.mxu0 0.0
    %1109 = vmatprep.subr.mxu0 0.0
    %1110 = vmatpush1.msra.mxu0 0.0
    %1111 = vmatprep.subr.mxu0 0.0
    %1112 = vmatpush1.msra.mxu0 0.0
    %1113 = vmatprep.subr.mxu0 0.0
    %1114 = vmatpush1.msra.mxu0 0.0
    %1115 = vmatprep.subr.mxu0 0.0
    %1116 = vmatpush1.msra.mxu0 0.0
    %1117 = vmatprep.subr.mxu0 0.0
    %1118 = vmatpush1.msra.mxu0 0.0
    %1119 = vmatprep.subr.mxu0 0.0
    %1120 = vmatpush1.msra.mxu0 0.0
    %1121 = vmatprep.subr.mxu0 0.0
    %1122 = vmatpush1.msra.mxu0 0.0
    %1123 = vmatprep.subr.mxu0 0.0
    %1124 = vmatpush1.msra.mxu0 0.0
    %1125 = vmatprep.subr.mxu0 0.0
    %1126 = vmatpush1.msra.mxu0 0.0
    %1127 = vmatprep.subr.mxu0 0.0
    %1128 = vmatpush1.msra.mxu0 0.0
    %1129 = vmatprep.subr.mxu0 0.0
    %1130 = vmatpush1.msra.mxu0 0.0
    %1131 = vmatprep.subr.mxu0 0.0
    %1132 = vmatpush1.msra.mxu0 0.0
    %1133 = vmatprep.subr.mxu0 0.0
    %1134 = vmatpush1.msra.mxu0 0.0
    %1135 = vmatprep.subr.mxu0 0.0
    %1136 = vmatpush1.msra.mxu0 0.0
    %1137 = vmatprep.subr.mxu0 0.0
    %1138 = vmatpush1.msra.mxu0 0.0
    %1139 = vmatprep.subr.mxu0 0.0
    %1140 = vmatpush1.msra.mxu0 0.0
    %1141 = vmatprep.subr.mxu0 0.0
    %1142 = vmatpush1.msra.mxu0 0.0
    %1143 = vmatprep.subr.mxu0 0.0
    %1144 = vmatpush1.msra.mxu0 0.0
    %1145 = vmatprep.subr.mxu0 0.0
    %1146 = vmatpush1.msra.mxu0 0.0
    %1147 = vmatprep.subr.mxu0 0.0
    %1148 = vmatpush1.msra.mxu0 0.0
    %1149 = vmatprep.subr.mxu0 0.0
    %1150 = vmatpush1.msra.mxu0 0.0
    %1151 = vmatprep.subr.mxu0 0.0
    %1152 = vmatpush1.msra.mxu0 0.0
    %1153 = vmatprep.subr.mxu0 0.0
    %1154 = vmatpush1.msra.mxu0 0.0
    %1155 = vmatprep.subr.mxu0 0.0
    %1156 = vmatpush1.msra.mxu0 0.0
    %1157 = vmatprep.subr.mxu0 0.0
    %1158 = vmatpush1.msra.mxu0 0.0
    %1159 = vmatprep.subr.mxu0 0.0
    %1160 = vmatpush1.msra.mxu0 0.0
    %1161 = vmatprep.subr.mxu0 0.0
    %1162 = vmatpush1.msra.mxu0 0.0
    %1163 = vmatprep.subr.mxu0 0.0
    %1164 = vmatpush1.msra.mxu0 0.0
    %1165 = vmatprep.mubr.f32.mxu0 0.0
    %1166 = vmatmul.mubr.f32.gmra.mrb[0].mxu0 %v1096
    %v1167 = vpop.f32.mrb[0].mxu0
    %v1168 = vadd.f32 0.0, %v1167
    %v1169 = vpop.f32.mrb[0].mxu0
    %1170 = vmatprep.mubr.f32.mxu0 0.0
    %1171 = vmatmul.mubr.f32.gmra.mrb[0].mxu0 %v1099
    %v1172 = vpop.f32.mrb[0].mxu0
    %v1173 = vadd.f32 0.0, %v1172
    %v1174 = vpop.f32.mrb[0].mxu0
    %1175 = vdwg.mxu0
    %v1176 = vmul.f32 %v925, %v925
    %v1177 = vmul.f32 %v930, %v930
    %v1178 = vmul.f32 %v1006, %v1006
    %v1179 = vmul.f32 %v1011, %v1011
    %v1180 = vmul.f32 %v1087, %v1087
    %v1181 = vmul.f32 %v1092, %v1092
    %v1182 = vmul.f32 %v1168, %v1168
    %v1183 = vmul.f32 %v1173, %v1173
    %v1184 = vsel %vm438, %v1176, 0.0
    %1185 = vadd.xlane.f32.xlu0 %v1184
    %v1186 = vpop.xlane.xlu0 %1185
    %v1187 = vsel %vm438, %v1177, 0.0
    %1188 = vadd.xlane.f32.xlu0 %v1187
    %v1189 = vpop.xlane.xlu0 %1188
    %v1190 = vsel %vm438, %v1178, 0.0
    %1191 = vadd.xlane.f32.xlu0 %v1190
    %v1192 = vpop.xlane.xlu0 %1191
    %v1193 = vsel %vm438, %v1179, 0.0
    %1194 = vadd.xlane.f32.xlu0 %v1193
    %v1195 = vpop.xlane.xlu0 %1194
    %v1196 = vsel %vm438, %v1180, 0.0
    %1197 = vadd.xlane.f32.xlu0 %v1196
    %v1198 = vpop.xlane.xlu0 %1197
    %v1199 = vsel %vm438, %v1181, 0.0
    %1200 = vadd.xlane.f32.xlu0 %v1199
    %v1201 = vpop.xlane.xlu0 %1200
    %v1202 = vsel %vm438, %v1182, 0.0
    %1203 = vadd.xlane.f32.xlu0 %v1202
    %v1204 = vpop.xlane.xlu0 %1203
    %v1205 = vsel %vm438, %v1183, 0.0
    %1206 = vadd.xlane.f32.xlu0 %v1205
    %v1207 = vpop.xlane.xlu0 %1206
    %v1208 = vrcp.pop 32.0
    %v1209 = vmul.f32 %v1186, %v1208
    %v1210 = vmul.f32 %v1189, %v1208
    %v1211 = vmul.f32 %v1192, %v1208
    %v1212 = vmul.f32 %v1195, %v1208
    %v1213 = vmul.f32 %v1198, %v1208
    %v1214 = vmul.f32 %v1201, %v1208
    %v1215 = vmul.f32 %v1204, %v1208
    %v1216 = vmul.f32 %v1207, %v1208
    %v1217 = vadd.f32 %v1209, 1e-05
    %v1218 = vadd.f32 %v1210, 1e-05
    %v1219 = vadd.f32 %v1211, 1e-05
    %v1220 = vadd.f32 %v1212, 1e-05
    %v1221 = vadd.f32 %v1213, 1e-05
    %v1222 = vadd.f32 %v1214, 1e-05
    %v1223 = vadd.f32 %v1215, 1e-05
    %v1224 = vadd.f32 %v1216, 1e-05
    %v1225 = vrsqrt.pop %v1217
    %v1226 = vrsqrt.pop %v1218
    %v1227 = vrsqrt.pop %v1219
    %v1228 = vrsqrt.pop %v1220
    %v1229 = vrsqrt.pop %v1221
    %v1230 = vrsqrt.pop %v1222
    %v1231 = vrsqrt.pop %v1223
    %v1232 = vrsqrt.pop %v1224
    %v1233 = vmul.f32 %v925, %v1225
    %v1234 = vmul.f32 %v930, %v1226
    %v1235 = vmul.f32 %v1006, %v1227
    %v1236 = vmul.f32 %v1011, %v1228
    %v1237 = vmul.f32 %v1087, %v1229
    %v1238 = vmul.f32 %v1092, %v1230
    %v1239 = vmul.f32 %v1168, %v1231
    %v1240 = vmul.f32 %v1173, %v1232
    %1243 = vrot.lane.b32.xlu0 %v1235, 32
    %v1244 = vpop.permute.xlu0 %1243
    %1245 = vrot.lane.b32.xlu0 %v1236, 32
    %v1246 = vpop.permute.xlu0 %1245
    %1251 = vrot.lane.b32.xlu0 %v1237, 64
    %v1252 = vpop.permute.xlu0 %1251
    %1253 = vrot.lane.b32.xlu0 %v1238, 64
    %v1254 = vpop.permute.xlu0 %1253
    %1259 = vrot.lane.b32.xlu0 %v1239, 96
    %v1260 = vpop.permute.xlu0 %1259
    %1261 = vrot.lane.b32.xlu0 %v1240, 96
    %v1262 = vpop.permute.xlu0 %1261
    %v1265 = vsel %vm438, %v1233, %v1244
    %v1266 = vsel %vm438, %v1234, %v1246
    %vm1267 = vcmask 523264
    %v1268 = vsel %vm1267, %v1265, %v1252
    %v1269 = vsel %vm1267, %v1266, %v1254
    %vm1270 = vcmask 785408
    %v1271 = vsel %vm1270, %v1268, %v1260
    %v1272 = vsel %vm1270, %v1269, %v1262
    %v1273 = vld [vmem:[%s6] sm:$0x1]
    %v1275 = vlaneseq
    %v1276 = vshrl.u32 %v1275, 7
    %v1277 = vsub.s32 0, %v1276
    %v1278 = vrot.slane %v1273, %v1277
    %v1280 = vmul.f32 %v1271, %v1278
    %v1281 = vmul.f32 %v1272, %v1278
    %v1282 = vmul.f32 %v1280, %v384
    %v1283 = vmul.f32 %v1281, %v388
    %v1284 = vpack.c.bf16 %v1283, %v1282
    %v1285 = vld [vmem:[%s7] sm:$0xf]
    %v1286 = vld [vmem:[%s7 + $0x4] sm:$0xf]
    %v1287 = vld [vmem:[%s7 + $0x8] sm:$0xf]
    %v1288 = vld [vmem:[%s7 + $0xc] sm:$0xf]
    %v1289 = vld [vmem:[%s7 + $0x10] sm:$0xf]
    %v1290 = vld [vmem:[%s7 + $0x14] sm:$0xf]
    %v1291 = vld [vmem:[%s7 + $0x18] sm:$0xf]
    %v1292 = vld [vmem:[%s7 + $0x1c] sm:$0xf]
    %v1293 = vld [vmem:[%s7 + $0x20] sm:$0xf]
    %v1294 = vld [vmem:[%s7 + $0x24] sm:$0xf]
    %v1295 = vld [vmem:[%s7 + $0x28] sm:$0xf]
    %v1296 = vld [vmem:[%s7 + $0x2c] sm:$0xf]
    %v1297 = vld [vmem:[%s7 + $0x30] sm:$0xf]
    %v1298 = vld [vmem:[%s7 + $0x34] sm:$0xf]
    %v1299 = vld [vmem:[%s7 + $0x38] sm:$0xf]
    %v1300 = vld [vmem:[%s7 + $0x3c] sm:$0xf]
    %v1301 = vld [vmem:[%s8] sm:$0x1]
    %v1303 = vlaneseq
    %v1304 = vshrl.u32 %v1303, 7
    %v1305 = vsub.s32 0, %v1304
    %v1306 = vrot.slane %v1301, %v1305
    %v1324 = vunpack.c.l.b16 %v1285
    %v1325 = vunpack.c.l.b16 %v1286
    %v1326 = vunpack.c.l.b16 %v1287
    %v1327 = vunpack.c.l.b16 %v1288
    %v1328 = vunpack.c.l.b16 %v1289
    %v1329 = vunpack.c.l.b16 %v1290
    %v1330 = vunpack.c.l.b16 %v1291
    %v1331 = vunpack.c.l.b16 %v1292
    %v1332 = vunpack.c.l.b16 %v1293
    %v1333 = vunpack.c.l.b16 %v1294
    %v1334 = vunpack.c.l.b16 %v1295
    %v1335 = vunpack.c.l.b16 %v1296
    %v1336 = vunpack.c.l.b16 %v1297
    %v1337 = vunpack.c.l.b16 %v1298
    %v1338 = vunpack.c.l.b16 %v1299
    %v1339 = vunpack.c.l.b16 %v1300
    %v1340 = vpack.c.b16 %v1325, %v1324
    %v1341 = vpack.c.b16 %v1327, %v1326
    %v1342 = vpack.c.b16 %v1329, %v1328
    %v1343 = vpack.c.b16 %v1331, %v1330
    %v1344 = vpack.c.b16 %v1333, %v1332
    %v1345 = vpack.c.b16 %v1335, %v1334
    %v1346 = vpack.c.b16 %v1337, %v1336
    %v1347 = vpack.c.b16 %v1339, %v1338
    %1356 = vmatprep.subr.bf16.mxu0 0
    %1357 = vmatpush1.bf16.msra.mxu0 %v1340
    %1358 = vmatprep.subr.bf16.mxu0 0
    %1359 = vmatpush1.bf16.msra.mxu0 %v1341
    %1360 = vmatprep.subr.bf16.mxu0 0
    %1361 = vmatpush1.bf16.msra.mxu0 %v1342
    %1362 = vmatprep.subr.bf16.mxu0 0
    %1363 = vmatpush1.bf16.msra.mxu0 %v1343
    %1364 = vmatprep.subr.bf16.mxu0 0
    %1365 = vmatpush1.bf16.msra.mxu0 %v1344
    %1366 = vmatprep.subr.bf16.mxu0 0
    %1367 = vmatpush1.bf16.msra.mxu0 %v1345
    %1368 = vmatprep.subr.bf16.mxu0 0
    %1369 = vmatpush1.bf16.msra.mxu0 %v1346
    %1370 = vmatprep.subr.bf16.mxu0 0
    %1371 = vmatpush1.bf16.msra.mxu0 %v1347
    %1372 = vmatprep.subr.bf16.mxu0 0
    %1373 = vmatpush1.bf16.msra.mxu0 0
    %1374 = vmatprep.subr.bf16.mxu0 0
    %1375 = vmatpush1.bf16.msra.mxu0 0
    %1376 = vmatprep.subr.bf16.mxu0 0
    %1377 = vmatpush1.bf16.msra.mxu0 0
    %1378 = vmatprep.subr.bf16.mxu0 0
    %1379 = vmatpush1.bf16.msra.mxu0 0
    %1380 = vmatprep.subr.bf16.mxu0 0
    %1381 = vmatpush1.bf16.msra.mxu0 0
    %1382 = vmatprep.subr.bf16.mxu0 0
    %1383 = vmatpush1.bf16.msra.mxu0 0
    %1384 = vmatprep.subr.bf16.mxu0 0
    %1385 = vmatpush1.bf16.msra.mxu0 0
    %1386 = vmatprep.subr.bf16.mxu0 0
    %1387 = vmatpush1.bf16.msra.mxu0 0
    %1388 = vmatprep.mubr.bf16.mxu0 0
    %1389 = vmatmul.mubr.bf16.gmra.mrb[0].mxu0 %v1284
    %v1390 = vpop.f32.mrb[0].mxu0
    %v1391 = vadd.f32 %v1306, %v1390
    %v1392 = vpop.f32.mrb[0].mxu0
    %v1393 = vpop.f32.mrb[0].mxu0
    %v1394 = vadd.f32 %v1306, %v1393
    %v1395 = vpop.f32.mrb[0].mxu0
    %1396 = vdwg.mxu0
    %v1397 = vadd.f32 %v46, %v1391
    %v1398 = vadd.f32 %v47, %v1394
    %v1399 = vld [vmem:[%s9] sm:$0x1]
    %v1400 = vld [vmem:[%s10] sm:$0x1]
    %1401 = vadd.xlane.f32.xlu0 %v1397
    %v1402 = vpop.xlane.xlu0 %1401
    %1403 = vadd.xlane.f32.xlu0 %v1398
    %v1404 = vpop.xlane.xlu0 %1403
    %v1405 = vmul.f32 %v1402, %v54
    %v1406 = vmul.f32 %v1404, %v54
    %v1407 = vsub.f32 %v1397, %v1405
    %v1408 = vsub.f32 %v1398, %v1406
    %v1409 = vmul.f32 %v1407, %v1407
    %v1410 = vmul.f32 %v1408, %v1408
    %1411 = vadd.xlane.f32.xlu0 %v1409
    %v1412 = vpop.xlane.xlu0 %1411
    %1413 = vadd.xlane.f32.xlu0 %v1410
    %v1414 = vpop.xlane.xlu0 %1413
    %v1415 = vmul.f32 %v1412, %v54
    %v1416 = vmul.f32 %v1414, %v54
    %v1417 = vadd.f32 %v1415, 1e-05
    %v1418 = vadd.f32 %v1416, 1e-05
    %v1419 = vrsqrt.pop %v1417
    %v1420 = vrsqrt.pop %v1418
    %v1421 = vmul.f32 %v1407, %v1419
    %v1422 = vmul.f32 %v1408, %v1420
    %v1424 = vlaneseq
    %v1425 = vshrl.u32 %v1424, 7
    %v1426 = vsub.s32 0, %v1425
    %v1427 = vrot.slane %v1399, %v1426
    %v1429 = vmul.f32 %v1421, %v1427
    %v1430 = vmul.f32 %v1422, %v1427
    %v1432 = vlaneseq
    %v1433 = vshrl.u32 %v1432, 7
    %v1434 = vsub.s32 0, %v1433
    %v1435 = vrot.slane %v1400, %v1434
    %v1437 = vadd.f32 %v1429, %v1435
    %v1438 = vadd.f32 %v1430, %v1435
    %v1439 = vpack.c.bf16 %v1438, %v1437
    %v1440 = vld [vmem:[%s11] sm:$0xff]
    %v1441 = vld [vmem:[%s11 + $0x8] sm:$0xff]
    %v1442 = vld [vmem:[%s11 + $0x10] sm:$0xff]
    %v1443 = vld [vmem:[%s11 + $0x18] sm:$0xff]
    %v1444 = vld [vmem:[%s11 + $0x20] sm:$0xff]
    %v1445 = vld [vmem:[%s11 + $0x28] sm:$0xff]
    %v1446 = vld [vmem:[%s11 + $0x30] sm:$0xff]
    %v1447 = vld [vmem:[%s11 + $0x38] sm:$0xff]
    %v1448 = vld [vmem:[%s11 + $0x40] sm:$0xff]
    %v1449 = vld [vmem:[%s11 + $0x48] sm:$0xff]
    %v1450 = vld [vmem:[%s11 + $0x50] sm:$0xff]
    %v1451 = vld [vmem:[%s11 + $0x58] sm:$0xff]
    %v1452 = vld [vmem:[%s11 + $0x60] sm:$0xff]
    %v1453 = vld [vmem:[%s11 + $0x68] sm:$0xff]
    %v1454 = vld [vmem:[%s11 + $0x70] sm:$0xff]
    %v1455 = vld [vmem:[%s11 + $0x78] sm:$0xff]
    %v1456 = vld [vmem:[%s11 + $0x80] sm:$0xff]
    %v1457 = vld [vmem:[%s11 + $0x88] sm:$0xff]
    %v1458 = vld [vmem:[%s11 + $0x90] sm:$0xff]
    %v1459 = vld [vmem:[%s11 + $0x98] sm:$0xff]
    %v1460 = vld [vmem:[%s11 + $0xa0] sm:$0xff]
    %v1461 = vld [vmem:[%s11 + $0xa8] sm:$0xff]
    %v1462 = vld [vmem:[%s11 + $0xb0] sm:$0xff]
    %v1463 = vld [vmem:[%s11 + $0xb8] sm:$0xff]
    %v1464 = vld [vmem:[%s11 + $0xc0] sm:$0xff]
    %v1465 = vld [vmem:[%s11 + $0xc8] sm:$0xff]
    %v1466 = vld [vmem:[%s11 + $0xd0] sm:$0xff]
    %v1467 = vld [vmem:[%s11 + $0xd8] sm:$0xff]
    %v1468 = vld [vmem:[%s11 + $0xe0] sm:$0xff]
    %v1469 = vld [vmem:[%s11 + $0xe8] sm:$0xff]
    %v1470 = vld [vmem:[%s11 + $0xf0] sm:$0xff]
    %v1471 = vld [vmem:[%s11 + $0xf8] sm:$0xff]
    %v1472 = vld [vmem:[%s11 + $0x100] sm:$0xff]
    %v1473 = vld [vmem:[%s11 + $0x108] sm:$0xff]
    %v1474 = vld [vmem:[%s11 + $0x110] sm:$0xff]
    %v1475 = vld [vmem:[%s11 + $0x118] sm:$0xff]
    %v1476 = vld [vmem:[%s11 + $0x120] sm:$0xff]
    %v1477 = vld [vmem:[%s11 + $0x128] sm:$0xff]
    %v1478 = vld [vmem:[%s11 + $0x130] sm:$0xff]
    %v1479 = vld [vmem:[%s11 + $0x138] sm:$0xff]
    %v1480 = vld [vmem:[%s11 + $0x140] sm:$0xff]
    %v1481 = vld [vmem:[%s11 + $0x148] sm:$0xff]
    %v1482 = vld [vmem:[%s11 + $0x150] sm:$0xff]
    %v1483 = vld [vmem:[%s11 + $0x158] sm:$0xff]
    %v1484 = vld [vmem:[%s11 + $0x160] sm:$0xff]
    %v1485 = vld [vmem:[%s11 + $0x168] sm:$0xff]
    %v1486 = vld [vmem:[%s11 + $0x170] sm:$0xff]
    %v1487 = vld [vmem:[%s11 + $0x178] sm:$0xff]
    %v1536 = vunpack.c.l.b16 %v1440
    %v1537 = vunpack.c.h.b16 %v1440
    %v1538 = vunpack.c.l.b16 %v1441
    %v1539 = vunpack.c.h.b16 %v1441
    %v1540 = vunpack.c.l.b16 %v1442
    %v1541 = vunpack.c.h.b16 %v1442
    %v1542 = vunpack.c.l.b16 %v1443
    %v1543 = vunpack.c.h.b16 %v1443
    %v1544 = vunpack.c.l.b16 %v1444
    %v1545 = vunpack.c.h.b16 %v1444
    %v1546 = vunpack.c.l.b16 %v1445
    %v1547 = vunpack.c.h.b16 %v1445
    %v1548 = vunpack.c.l.b16 %v1446
    %v1549 = vunpack.c.h.b16 %v1446
    %v1550 = vunpack.c.l.b16 %v1447
    %v1551 = vunpack.c.h.b16 %v1447
    %v1552 = vunpack.c.l.b16 %v1448
    %v1553 = vunpack.c.h.b16 %v1448
    %v1554 = vunpack.c.l.b16 %v1449
    %v1555 = vunpack.c.h.b16 %v1449
    %v1556 = vunpack.c.l.b16 %v1450
    %v1557 = vunpack.c.h.b16 %v1450
    %v1558 = vunpack.c.l.b16 %v1451
    %v1559 = vunpack.c.h.b16 %v1451
    %v1560 = vunpack.c.l.b16 %v1452
    %v1561 = vunpack.c.h.b16 %v1452
    %v1562 = vunpack.c.l.b16 %v1453
    %v1563 = vunpack.c.h.b16 %v1453
    %v1564 = vunpack.c.l.b16 %v1454
    %v1565 = vunpack.c.h.b16 %v1454
    %v1566 = vunpack.c.l.b16 %v1455
    %v1567 = vunpack.c.h.b16 %v1455
    %v1568 = vunpack.c.l.b16 %v1456
    %v1569 = vunpack.c.h.b16 %v1456
    %v1570 = vunpack.c.l.b16 %v1457
    %v1571 = vunpack.c.h.b16 %v1457
    %v1572 = vunpack.c.l.b16 %v1458
    %v1573 = vunpack.c.h.b16 %v1458
    %v1574 = vunpack.c.l.b16 %v1459
    %v1575 = vunpack.c.h.b16 %v1459
    %v1576 = vunpack.c.l.b16 %v1460
    %v1577 = vunpack.c.h.b16 %v1460
    %v1578 = vunpack.c.l.b16 %v1461
    %v1579 = vunpack.c.h.b16 %v1461
    %v1580 = vunpack.c.l.b16 %v1462
    %v1581 = vunpack.c.h.b16 %v1462
    %v1582 = vunpack.c.l.b16 %v1463
    %v1583 = vunpack.c.h.b16 %v1463
    %v1584 = vunpack.c.l.b16 %v1464
    %v1585 = vunpack.c.h.b16 %v1464
    %v1586 = vunpack.c.l.b16 %v1465
    %v1587 = vunpack.c.h.b16 %v1465
    %v1588 = vunpack.c.l.b16 %v1466
    %v1589 = vunpack.c.h.b16 %v1466
    %v1590 = vunpack.c.l.b16 %v1467
    %v1591 = vunpack.c.h.b16 %v1467
    %v1592 = vunpack.c.l.b16 %v1468
    %v1593 = vunpack.c.h.b16 %v1468
    %v1594 = vunpack.c.l.b16 %v1469
    %v1595 = vunpack.c.h.b16 %v1469
    %v1596 = vunpack.c.l.b16 %v1470
    %v1597 = vunpack.c.h.b16 %v1470
    %v1598 = vunpack.c.l.b16 %v1471
    %v1599 = vunpack.c.h.b16 %v1471
    %v1600 = vunpack.c.l.b16 %v1472
    %v1601 = vunpack.c.h.b16 %v1472
    %v1602 = vunpack.c.l.b16 %v1473
    %v1603 = vunpack.c.h.b16 %v1473
    %v1604 = vunpack.c.l.b16 %v1474
    %v1605 = vunpack.c.h.b16 %v1474
    %v1606 = vunpack.c.l.b16 %v1475
    %v1607 = vunpack.c.h.b16 %v1475
    %v1608 = vunpack.c.l.b16 %v1476
    %v1609 = vunpack.c.h.b16 %v1476
    %v1610 = vunpack.c.l.b16 %v1477
    %v1611 = vunpack.c.h.b16 %v1477
    %v1612 = vunpack.c.l.b16 %v1478
    %v1613 = vunpack.c.h.b16 %v1478
    %v1614 = vunpack.c.l.b16 %v1479
    %v1615 = vunpack.c.h.b16 %v1479
    %v1616 = vunpack.c.l.b16 %v1480
    %v1617 = vunpack.c.h.b16 %v1480
    %v1618 = vunpack.c.l.b16 %v1481
    %v1619 = vunpack.c.h.b16 %v1481
    %v1620 = vunpack.c.l.b16 %v1482
    %v1621 = vunpack.c.h.b16 %v1482
    %v1622 = vunpack.c.l.b16 %v1483
    %v1623 = vunpack.c.h.b16 %v1483
    %v1624 = vunpack.c.l.b16 %v1484
    %v1625 = vunpack.c.h.b16 %v1484
    %v1626 = vunpack.c.l.b16 %v1485
    %v1627 = vunpack.c.h.b16 %v1485
    %v1628 = vunpack.c.l.b16 %v1486
    %v1629 = vunpack.c.h.b16 %v1486
    %v1630 = vunpack.c.l.b16 %v1487
    %v1631 = vunpack.c.h.b16 %v1487
    %v1632 = vpack.c.b16 %v1542, %v1536
    %v1633 = vpack.c.b16 %v1543, %v1537
    %v1634 = vpack.c.b16 %v1544, %v1538
    %v1635 = vpack.c.b16 %v1545, %v1539
    %v1636 = vpack.c.b16 %v1546, %v1540
    %v1637 = vpack.c.b16 %v1547, %v1541
    %v1638 = vpack.c.b16 %v1554, %v1548
    %v1639 = vpack.c.b16 %v1555, %v1549
    %v1640 = vpack.c.b16 %v1556, %v1550
    %v1641 = vpack.c.b16 %v1557, %v1551
    %v1642 = vpack.c.b16 %v1558, %v1552
    %v1643 = vpack.c.b16 %v1559, %v1553
    %v1644 = vpack.c.b16 %v1566, %v1560
    %v1645 = vpack.c.b16 %v1567, %v1561
    %v1646 = vpack.c.b16 %v1568, %v1562
    %v1647 = vpack.c.b16 %v1569, %v1563
    %v1648 = vpack.c.b16 %v1570, %v1564
    %v1649 = vpack.c.b16 %v1571, %v1565
    %v1650 = vpack.c.b16 %v1578, %v1572
    %v1651 = vpack.c.b16 %v1579, %v1573
    %v1652 = vpack.c.b16 %v1580, %v1574
    %v1653 = vpack.c.b16 %v1581, %v1575
    %v1654 = vpack.c.b16 %v1582, %v1576
    %v1655 = vpack.c.b16 %v1583, %v1577
    %v1656 = vpack.c.b16 %v1590, %v1584
    %v1657 = vpack.c.b16 %v1591, %v1585
    %v1658 = vpack.c.b16 %v1592, %v1586
    %v1659 = vpack.c.b16 %v1593, %v1587
    %v1660 = vpack.c.b16 %v1594, %v1588
    %v1661 = vpack.c.b16 %v1595, %v1589
    %v1662 = vpack.c.b16 %v1602, %v1596
    %v1663 = vpack.c.b16 %v1603, %v1597
    %v1664 = vpack.c.b16 %v1604, %v1598
    %v1665 = vpack.c.b16 %v1605, %v1599
    %v1666 = vpack.c.b16 %v1606, %v1600
    %v1667 = vpack.c.b16 %v1607, %v1601
    %v1668 = vpack.c.b16 %v1614, %v1608
    %v1669 = vpack.c.b16 %v1615, %v1609
    %v1670 = vpack.c.b16 %v1616, %v1610
    %v1671 = vpack.c.b16 %v1617, %v1611
    %v1672 = vpack.c.b16 %v1618, %v1612
    %v1673 = vpack.c.b16 %v1619, %v1613
    %v1674 = vpack.c.b16 %v1626, %v1620
    %v1675 = vpack.c.b16 %v1627, %v1621
    %v1676 = vpack.c.b16 %v1628, %v1622
    %v1677 = vpack.c.b16 %v1629, %v1623
    %v1678 = vpack.c.b16 %v1630, %v1624
    %v1679 = vpack.c.b16 %v1631, %v1625
    %1728 = vmatprep.subr.bf16.mxu0 %v1633
    %1729 = vmatpush1.bf16.msra.mxu0 %v1632
    %1730 = vmatprep.subr.bf16.mxu0 %v1639
    %1731 = vmatpush1.bf16.msra.mxu0 %v1638
    %1732 = vmatprep.subr.bf16.mxu0 %v1645
    %1733 = vmatpush1.bf16.msra.mxu0 %v1644
    %1734 = vmatprep.subr.bf16.mxu0 %v1651
    %1735 = vmatpush1.bf16.msra.mxu0 %v1650
    %1736 = vmatprep.subr.bf16.mxu0 %v1657
    %1737 = vmatpush1.bf16.msra.mxu0 %v1656
    %1738 = vmatprep.subr.bf16.mxu0 %v1663
    %1739 = vmatpush1.bf16.msra.mxu0 %v1662
    %1740 = vmatprep.subr.bf16.mxu0 %v1669
    %1741 = vmatpush1.bf16.msra.mxu0 %v1668
    %1742 = vmatprep.subr.bf16.mxu0 %v1675
    %1743 = vmatpush1.bf16.msra.mxu0 %v1674
    %1744 = vmatprep.subr.bf16.mxu0 0
    %1745 = vmatpush1.bf16.msra.mxu0 0
    %1746 = vmatprep.subr.bf16.mxu0 0
    %1747 = vmatpush1.bf16.msra.mxu0 0
    %1748 = vmatprep.subr.bf16.mxu0 0
    %1749 = vmatpush1.bf16.msra.mxu0 0
    %1750 = vmatprep.subr.bf16.mxu0 0
    %1751 = vmatpush1.bf16.msra.mxu0 0
    %1752 = vmatprep.subr.bf16.mxu0 0
    %1753 = vmatpush1.bf16.msra.mxu0 0
    %1754 = vmatprep.subr.bf16.mxu0 0
    %1755 = vmatpush1.bf16.msra.mxu0 0
    %1756 = vmatprep.subr.bf16.mxu0 0
    %1757 = vmatpush1.bf16.msra.mxu0 0
    %1758 = vmatprep.subr.bf16.mxu0 0
    %1759 = vmatpush1.bf16.msra.mxu0 0
    %1760 = vmatprep.mubr.bf16.mxu0 0
    %1761 = vmatmul.mubr.bf16.gmra.mrb[0].mxu0 %v1439
    %v1762 = vpop.f32.mrb[0].mxu0
    %v1763 = vadd.f32 0.0, %v1762
    %v1764 = vpop.f32.mrb[0].mxu0
    %v1765 = vadd.f32 0.0, %v1764
    %v1766 = vpop.f32.mrb[0].mxu0
    %v1767 = vadd.f32 0.0, %v1766
    %v1768 = vpop.f32.mrb[0].mxu0
    %v1769 = vadd.f32 0.0, %v1768
    %1770 = vdwg.mxu0
    %1771 = vmatprep.subr.bf16.mxu0 %v1635
    %1772 = vmatpush1.bf16.msra.mxu0 %v1634
    %1773 = vmatprep.subr.bf16.mxu0 %v1641
    %1774 = vmatpush1.bf16.msra.mxu0 %v1640
    %1775 = vmatprep.subr.bf16.mxu0 %v1647
    %1776 = vmatpush1.bf16.msra.mxu0 %v1646
    %1777 = vmatprep.subr.bf16.mxu0 %v1653
    %1778 = vmatpush1.bf16.msra.mxu0 %v1652
    %1779 = vmatprep.subr.bf16.mxu0 %v1659
    %1780 = vmatpush1.bf16.msra.mxu0 %v1658
    %1781 = vmatprep.subr.bf16.mxu0 %v1665
    %1782 = vmatpush1.bf16.msra.mxu0 %v1664
    %1783 = vmatprep.subr.bf16.mxu0 %v1671
    %1784 = vmatpush1.bf16.msra.mxu0 %v1670
    %1785 = vmatprep.subr.bf16.mxu0 %v1677
    %1786 = vmatpush1.bf16.msra.mxu0 %v1676
    %1787 = vmatprep.subr.bf16.mxu0 0
    %1788 = vmatpush1.bf16.msra.mxu0 0
    %1789 = vmatprep.subr.bf16.mxu0 0
    %1790 = vmatpush1.bf16.msra.mxu0 0
    %1791 = vmatprep.subr.bf16.mxu0 0
    %1792 = vmatpush1.bf16.msra.mxu0 0
    %1793 = vmatprep.subr.bf16.mxu0 0
    %1794 = vmatpush1.bf16.msra.mxu0 0
    %1795 = vmatprep.subr.bf16.mxu0 0
    %1796 = vmatpush1.bf16.msra.mxu0 0
    %1797 = vmatprep.subr.bf16.mxu0 0
    %1798 = vmatpush1.bf16.msra.mxu0 0
    %1799 = vmatprep.subr.bf16.mxu0 0
    %1800 = vmatpush1.bf16.msra.mxu0 0
    %1801 = vmatprep.subr.bf16.mxu0 0
    %1802 = vmatpush1.bf16.msra.mxu0 0
    %1803 = vmatprep.mubr.bf16.mxu0 0
    %1804 = vmatmul.mubr.bf16.gmra.mrb[0].mxu0 %v1439
    %v1805 = vpop.f32.mrb[0].mxu0
    %v1806 = vadd.f32 0.0, %v1805
    %v1807 = vpop.f32.mrb[0].mxu0
    %v1808 = vadd.f32 0.0, %v1807
    %v1809 = vpop.f32.mrb[0].mxu0
    %v1810 = vadd.f32 0.0, %v1809
    %v1811 = vpop.f32.mrb[0].mxu0
    %v1812 = vadd.f32 0.0, %v1811
    %1813 = vdwg.mxu0
    %1814 = vmatprep.subr.bf16.mxu0 %v1637
    %1815 = vmatpush1.bf16.msra.mxu0 %v1636
    %1816 = vmatprep.subr.bf16.mxu0 %v1643
    %1817 = vmatpush1.bf16.msra.mxu0 %v1642
    %1818 = vmatprep.subr.bf16.mxu0 %v1649
    %1819 = vmatpush1.bf16.msra.mxu0 %v1648
    %1820 = vmatprep.subr.bf16.mxu0 %v1655
    %1821 = vmatpush1.bf16.msra.mxu0 %v1654
    %1822 = vmatprep.subr.bf16.mxu0 %v1661
    %1823 = vmatpush1.bf16.msra.mxu0 %v1660
    %1824 = vmatprep.subr.bf16.mxu0 %v1667
    %1825 = vmatpush1.bf16.msra.mxu0 %v1666
    %1826 = vmatprep.subr.bf16.mxu0 %v1673
    %1827 = vmatpush1.bf16.msra.mxu0 %v1672
    %1828 = vmatprep.subr.bf16.mxu0 %v1679
    %1829 = vmatpush1.bf16.msra.mxu0 %v1678
    %1830 = vmatprep.subr.bf16.mxu0 0
    %1831 = vmatpush1.bf16.msra.mxu0 0
    %1832 = vmatprep.subr.bf16.mxu0 0
    %1833 = vmatpush1.bf16.msra.mxu0 0
    %1834 = vmatprep.subr.bf16.mxu0 0
    %1835 = vmatpush1.bf16.msra.mxu0 0
    %1836 = vmatprep.subr.bf16.mxu0 0
    %1837 = vmatpush1.bf16.msra.mxu0 0
    %1838 = vmatprep.subr.bf16.mxu0 0
    %1839 = vmatpush1.bf16.msra.mxu0 0
    %1840 = vmatprep.subr.bf16.mxu0 0
    %1841 = vmatpush1.bf16.msra.mxu0 0
    %1842 = vmatprep.subr.bf16.mxu0 0
    %1843 = vmatpush1.bf16.msra.mxu0 0
    %1844 = vmatprep.subr.bf16.mxu0 0
    %1845 = vmatpush1.bf16.msra.mxu0 0
    %1846 = vmatprep.mubr.bf16.mxu0 0
    %1847 = vmatmul.mubr.bf16.gmra.mrb[0].mxu0 %v1439
    %v1848 = vpop.f32.mrb[0].mxu0
    %v1849 = vadd.f32 0.0, %v1848
    %v1850 = vpop.f32.mrb[0].mxu0
    %v1851 = vadd.f32 0.0, %v1850
    %v1852 = vpop.f32.mrb[0].mxu0
    %v1853 = vadd.f32 0.0, %v1852
    %v1854 = vpop.f32.mrb[0].mxu0
    %v1855 = vadd.f32 0.0, %v1854
    %1856 = vdwg.mxu0
    %v1857 = vxor.u32 %v1763, 2147483648
    %v1858 = vxor.u32 %v1765, 2147483648
    %v1859 = vxor.u32 %v1806, 2147483648
    %v1860 = vxor.u32 %v1767, 2147483648
    %v1861 = vxor.u32 %v1769, 2147483648
    %v1862 = vxor.u32 %v1810, 2147483648
    %v1863 = vmul.f32 %v1857, 1.442695
    %v1864 = vpow.pop %v1863
    %v1865 = vmul.f32 %v1858, 1.442695
    %v1866 = vpow.pop %v1865
    %v1867 = vmul.f32 %v1859, 1.442695
    %v1868 = vpow.pop %v1867
    %v1869 = vmul.f32 %v1860, 1.442695
    %v1870 = vpow.pop %v1869
    %v1871 = vmul.f32 %v1861, 1.442695
    %v1872 = vpow.pop %v1871
    %v1873 = vmul.f32 %v1862, 1.442695
    %v1874 = vpow.pop %v1873
    %v1875 = vadd.f32 %v1864, 1.0
    %v1876 = vadd.f32 %v1866, 1.0
    %v1877 = vadd.f32 %v1868, 1.0
    %v1878 = vadd.f32 %v1870, 1.0
    %v1879 = vadd.f32 %v1872, 1.0
    %v1880 = vadd.f32 %v1874, 1.0
    %v1881 = vrcp.pop %v1875
    %v1882 = vmul.f32 1.0, %v1881
    %v1883 = vrcp.pop %v1876
    %v1884 = vmul.f32 1.0, %v1883
    %v1885 = vrcp.pop %v1877
    %v1886 = vmul.f32 1.0, %v1885
    %v1887 = vrcp.pop %v1878
    %v1888 = vmul.f32 1.0, %v1887
    %v1889 = vrcp.pop %v1879
    %v1890 = vmul.f32 1.0, %v1889
    %v1891 = vrcp.pop %v1880
    %v1892 = vmul.f32 1.0, %v1891
    %v1893 = vmul.f32 %v1763, %v1882
    %v1894 = vmul.f32 %v1765, %v1884
    %v1895 = vmul.f32 %v1806, %v1886
    %v1896 = vmul.f32 %v1767, %v1888
    %v1897 = vmul.f32 %v1769, %v1890
    %v1898 = vmul.f32 %v1810, %v1892
    %v1899 = vmul.f32 %v1893, %v1808
    %v1900 = vmul.f32 %v1894, %v1849
    %v1901 = vmul.f32 %v1895, %v1851
    %v1902 = vmul.f32 %v1896, %v1812
    %v1903 = vmul.f32 %v1897, %v1853
    %v1904 = vmul.f32 %v1898, %v1855
    %v1905 = vpack.c.bf16 %v1902, %v1899
    %v1906 = vpack.c.bf16 %v1903, %v1900
    %v1907 = vpack.c.bf16 %v1904, %v1901
    %v1908 = vld [vmem:[%s12] sm:$0xf]
    %v1909 = vld [vmem:[%s12 + $0x4] sm:$0xf]
    %v1910 = vld [vmem:[%s12 + $0x8] sm:$0xf]
    %v1911 = vld [vmem:[%s12 + $0xc] sm:$0xf]
    %v1912 = vld [vmem:[%s12 + $0x10] sm:$0xf]
    %v1913 = vld [vmem:[%s12 + $0x14] sm:$0xf]
    %v1914 = vld [vmem:[%s12 + $0x18] sm:$0xf]
    %v1915 = vld [vmem:[%s12 + $0x1c] sm:$0xf]
    %v1916 = vld [vmem:[%s12 + $0x20] sm:$0xf]
    %v1917 = vld [vmem:[%s12 + $0x24] sm:$0xf]
    %v1918 = vld [vmem:[%s12 + $0x28] sm:$0xf]
    %v1919 = vld [vmem:[%s12 + $0x2c] sm:$0xf]
    %v1920 = vld [vmem:[%s12 + $0x30] sm:$0xf]
    %v1921 = vld [vmem:[%s12 + $0x34] sm:$0xf]
    %v1922 = vld [vmem:[%s12 + $0x38] sm:$0xf]
    %v1923 = vld [vmem:[%s12 + $0x3c] sm:$0xf]
    %v1924 = vld [vmem:[%s12 + $0x40] sm:$0xf]
    %v1925 = vld [vmem:[%s12 + $0x44] sm:$0xf]
    %v1926 = vld [vmem:[%s12 + $0x48] sm:$0xf]
    %v1927 = vld [vmem:[%s12 + $0x4c] sm:$0xf]
    %v1928 = vld [vmem:[%s12 + $0x50] sm:$0xf]
    %v1929 = vld [vmem:[%s12 + $0x54] sm:$0xf]
    %v1930 = vld [vmem:[%s12 + $0x58] sm:$0xf]
    %v1931 = vld [vmem:[%s12 + $0x5c] sm:$0xf]
    %v1932 = vld [vmem:[%s12 + $0x60] sm:$0xf]
    %v1933 = vld [vmem:[%s12 + $0x64] sm:$0xf]
    %v1934 = vld [vmem:[%s12 + $0x68] sm:$0xf]
    %v1935 = vld [vmem:[%s12 + $0x6c] sm:$0xf]
    %v1936 = vld [vmem:[%s12 + $0x70] sm:$0xf]
    %v1937 = vld [vmem:[%s12 + $0x74] sm:$0xf]
    %v1938 = vld [vmem:[%s12 + $0x78] sm:$0xf]
    %v1939 = vld [vmem:[%s12 + $0x7c] sm:$0xf]
    %v1940 = vld [vmem:[%s12 + $0x80] sm:$0xf]
    %v1941 = vld [vmem:[%s12 + $0x84] sm:$0xf]
    %v1942 = vld [vmem:[%s12 + $0x88] sm:$0xf]
    %v1943 = vld [vmem:[%s12 + $0x8c] sm:$0xf]
    %v1944 = vld [vmem:[%s12 + $0x90] sm:$0xf]
    %v1945 = vld [vmem:[%s12 + $0x94] sm:$0xf]
    %v1946 = vld [vmem:[%s12 + $0x98] sm:$0xf]
    %v1947 = vld [vmem:[%s12 + $0x9c] sm:$0xf]
    %v1948 = vld [vmem:[%s12 + $0xa0] sm:$0xf]
    %v1949 = vld [vmem:[%s12 + $0xa4] sm:$0xf]
    %v1950 = vld [vmem:[%s12 + $0xa8] sm:$0xf]
    %v1951 = vld [vmem:[%s12 + $0xac] sm:$0xf]
    %v1952 = vld [vmem:[%s12 + $0xb0] sm:$0xf]
    %v1953 = vld [vmem:[%s12 + $0xb4] sm:$0xf]
    %v1954 = vld [vmem:[%s12 + $0xb8] sm:$0xf]
    %v1955 = vld [vmem:[%s12 + $0xbc] sm:$0xf]
    %v2004 = vunpack.c.l.b16 %v1908
    %v2005 = vunpack.c.l.b16 %v1909
    %v2006 = vunpack.c.l.b16 %v1910
    %v2007 = vunpack.c.l.b16 %v1911
    %v2008 = vunpack.c.l.b16 %v1912
    %v2009 = vunpack.c.l.b16 %v1913
    %v2010 = vunpack.c.l.b16 %v1914
    %v2011 = vunpack.c.l.b16 %v1915
    %v2012 = vunpack.c.l.b16 %v1916
    %v2013 = vunpack.c.l.b16 %v1917
    %v2014 = vunpack.c.l.b16 %v1918
    %v2015 = vunpack.c.l.b16 %v1919
    %v2016 = vunpack.c.l.b16 %v1920
    %v2017 = vunpack.c.l.b16 %v1921
    %v2018 = vunpack.c.l.b16 %v1922
    %v2019 = vunpack.c.l.b16 %v1923
    %v2020 = vunpack.c.l.b16 %v1924
    %v2021 = vunpack.c.l.b16 %v1925
    %v2022 = vunpack.c.l.b16 %v1926
    %v2023 = vunpack.c.l.b16 %v1927
    %v2024 = vunpack.c.l.b16 %v1928
    %v2025 = vunpack.c.l.b16 %v1929
    %v2026 = vunpack.c.l.b16 %v1930
    %v2027 = vunpack.c.l.b16 %v1931
    %v2028 = vunpack.c.l.b16 %v1932
    %v2029 = vunpack.c.l.b16 %v1933
    %v2030 = vunpack.c.l.b16 %v1934
    %v2031 = vunpack.c.l.b16 %v1935
    %v2032 = vunpack.c.l.b16 %v1936
    %v2033 = vunpack.c.l.b16 %v1937
    %v2034 = vunpack.c.l.b16 %v1938
    %v2035 = vunpack.c.l.b16 %v1939
    %v2036 = vunpack.c.l.b16 %v1940
    %v2037 = vunpack.c.l.b16 %v1941
    %v2038 = vunpack.c.l.b16 %v1942
    %v2039 = vunpack.c.l.b16 %v1943
    %v2040 = vunpack.c.l.b16 %v1944
    %v2041 = vunpack.c.l.b16 %v1945
    %v2042 = vunpack.c.l.b16 %v1946
    %v2043 = vunpack.c.l.b16 %v1947
    %v2044 = vunpack.c.l.b16 %v1948
    %v2045 = vunpack.c.l.b16 %v1949
    %v2046 = vunpack.c.l.b16 %v1950
    %v2047 = vunpack.c.l.b16 %v1951
    %v2048 = vunpack.c.l.b16 %v1952
    %v2049 = vunpack.c.l.b16 %v1953
    %v2050 = vunpack.c.l.b16 %v1954
    %v2051 = vunpack.c.l.b16 %v1955
    %v2052 = vpack.c.b16 %v2005, %v2004
    %v2053 = vpack.c.b16 %v2007, %v2006
    %v2054 = vpack.c.b16 %v2009, %v2008
    %v2055 = vpack.c.b16 %v2011, %v2010
    %v2056 = vpack.c.b16 %v2013, %v2012
    %v2057 = vpack.c.b16 %v2015, %v2014
    %v2058 = vpack.c.b16 %v2017, %v2016
    %v2059 = vpack.c.b16 %v2019, %v2018
    %v2060 = vpack.c.b16 %v2021, %v2020
    %v2061 = vpack.c.b16 %v2023, %v2022
    %v2062 = vpack.c.b16 %v2025, %v2024
    %v2063 = vpack.c.b16 %v2027, %v2026
    %v2064 = vpack.c.b16 %v2029, %v2028
    %v2065 = vpack.c.b16 %v2031, %v2030
    %v2066 = vpack.c.b16 %v2033, %v2032
    %v2067 = vpack.c.b16 %v2035, %v2034
    %v2068 = vpack.c.b16 %v2037, %v2036
    %v2069 = vpack.c.b16 %v2039, %v2038
    %v2070 = vpack.c.b16 %v2041, %v2040
    %v2071 = vpack.c.b16 %v2043, %v2042
    %v2072 = vpack.c.b16 %v2045, %v2044
    %v2073 = vpack.c.b16 %v2047, %v2046
    %v2074 = vpack.c.b16 %v2049, %v2048
    %v2075 = vpack.c.b16 %v2051, %v2050
    %2100 = vmatprep.subr.bf16.mxu0 0
    %2101 = vmatpush1.bf16.msra.mxu0 %v2052
    %2102 = vmatprep.subr.bf16.mxu0 0
    %2103 = vmatpush1.bf16.msra.mxu0 %v2053
    %2104 = vmatprep.subr.bf16.mxu0 0
    %2105 = vmatpush1.bf16.msra.mxu0 %v2054
    %2106 = vmatprep.subr.bf16.mxu0 0
    %2107 = vmatpush1.bf16.msra.mxu0 %v2055
    %2108 = vmatprep.subr.bf16.mxu0 0
    %2109 = vmatpush1.bf16.msra.mxu0 %v2056
    %2110 = vmatprep.subr.bf16.mxu0 0
    %2111 = vmatpush1.bf16.msra.mxu0 %v2057
    %2112 = vmatprep.subr.bf16.mxu0 0
    %2113 = vmatpush1.bf16.msra.mxu0 %v2058
    %2114 = vmatprep.subr.bf16.mxu0 0
    %2115 = vmatpush1.bf16.msra.mxu0 %v2059
    %2116 = vmatprep.subr.bf16.mxu0 0
    %2117 = vmatpush1.bf16.msra.mxu0 %v2060
    %2118 = vmatprep.subr.bf16.mxu0 0
    %2119 = vmatpush1.bf16.msra.mxu0 %v2061
    %2120 = vmatprep.subr.bf16.mxu0 0
    %2121 = vmatpush1.bf16.msra.mxu0 %v2062
    %2122 = vmatprep.subr.bf16.mxu0 0
    %2123 = vmatpush1.bf16.msra.mxu0 %v2063
    %2124 = vmatprep.subr.bf16.mxu0 0
    %2125 = vmatpush1.bf16.msra.mxu0 %v2064
    %2126 = vmatprep.subr.bf16.mxu0 0
    %2127 = vmatpush1.bf16.msra.mxu0 %v2065
    %2128 = vmatprep.subr.bf16.mxu0 0
    %2129 = vmatpush1.bf16.msra.mxu0 %v2066
    %2130 = vmatprep.subr.bf16.mxu0 0
    %2131 = vmatpush1.bf16.msra.mxu0 %v2067
    %2132 = vmatprep.mubr.bf16.mxu0 %v1906
    %2133 = vmatmul.mubr.bf16.gmra.mrb[0].mxu0 %v1905
    %v2134 = vpop.f32.mrb[0].mxu0
    %v2135 = vadd.f32 0.0, %v2134
    %v2136 = vpop.f32.mrb[0].mxu0
    %v2137 = vpop.f32.mrb[0].mxu0
    %v2138 = vadd.f32 0.0, %v2137
    %v2139 = vpop.f32.mrb[0].mxu0
    %2140 = vdwg.mxu0
    %2141 = vmatprep.subr.bf16.mxu0 0
    %2142 = vmatpush1.bf16.msra.mxu0 %v2068
    %2143 = vmatprep.subr.bf16.mxu0 0
    %2144 = vmatpush1.bf16.msra.mxu0 %v2069
    %2145 = vmatprep.subr.bf16.mxu0 0
    %2146 = vmatpush1.bf16.msra.mxu0 %v2070
    %2147 = vmatprep.subr.bf16.mxu0 0
    %2148 = vmatpush1.bf16.msra.mxu0 %v2071
    %2149 = vmatprep.subr.bf16.mxu0 0
    %2150 = vmatpush1.bf16.msra.mxu0 %v2072
    %2151 = vmatprep.subr.bf16.mxu0 0
    %2152 = vmatpush1.bf16.msra.mxu0 %v2073
    %2153 = vmatprep.subr.bf16.mxu0 0
    %2154 = vmatpush1.bf16.msra.mxu0 %v2074
    %2155 = vmatprep.subr.bf16.mxu0 0
    %2156 = vmatpush1.bf16.msra.mxu0 %v2075
    %2157 = vmatprep.subr.bf16.mxu0 0
    %2158 = vmatpush1.bf16.msra.mxu0 0
    %2159 = vmatprep.subr.bf16.mxu0 0
    %2160 = vmatpush1.bf16.msra.mxu0 0
    %2161 = vmatprep.subr.bf16.mxu0 0
    %2162 = vmatpush1.bf16.msra.mxu0 0
    %2163 = vmatprep.subr.bf16.mxu0 0
    %2164 = vmatpush1.bf16.msra.mxu0 0
    %2165 = vmatprep.subr.bf16.mxu0 0
    %2166 = vmatpush1.bf16.msra.mxu0 0
    %2167 = vmatprep.subr.bf16.mxu0 0
    %2168 = vmatpush1.bf16.msra.mxu0 0
    %2169 = vmatprep.subr.bf16.mxu0 0
    %2170 = vmatpush1.bf16.msra.mxu0 0
    %2171 = vmatprep.subr.bf16.mxu0 0
    %2172 = vmatpush1.bf16.msra.mxu0 0
    %2173 = vmatprep.mubr.bf16.mxu0 0
    %2174 = vmatmul.mubr.bf16.gmra.mrb[0].mxu0 %v1907
    %v2175 = vpop.f32.mrb[0].mxu0
    %v2176 = vadd.f32 %v2135, %v2175
    %v2177 = vpop.f32.mrb[0].mxu0
    %v2178 = vpop.f32.mrb[0].mxu0
    %v2179 = vadd.f32 %v2138, %v2178
    %v2180 = vpop.f32.mrb[0].mxu0
    %2181 = vdwg.mxu0
    %v2182 = vadd.f32 %v1397, %v2176
    %v2183 = vadd.f32 %v1398, %v2179
    %2184 = vst [vmem:[#allocation2] sm:$0xff] %v2182
    %2185 = vst [vmem:[#allocation2 + $0x8] sm:$0xff] %v2183
    // Predicated region
    $region54: #{block_forward.1} parent=1 // pred_check
      _
    $region55: #{block_forward.1} parent=1 // pred_check_branch
      %2187 = sbr.rel (0) target = $region57
    $region56: #{block_forward.1} parent=1 // pred_region
      %s2189 = ssub.s32 256, 256
      %2190 = vsyncadd [#allocation3], %s2189
      %s2191 = sshll.u32 [#allocation2], 4
      %s2192 = int_to_ptr.vmem [resolvable:$true] %s2191
      %2197 = dma.vmem_to_hbm [thread:$0]  %s2192, 256, %s13, [#allocation3], 128, 128, 8
    $region57: #{block_forward.1} parent=1 // pred_fallthru
      _
    // Predicated region
    $region58: #{block_forward.1} parent=1 // pred_check
      _
    $region59: #{block_forward.1} parent=1 // pred_check_branch
      %2199 = sbr.rel (0) target = $region61
    $region60: #{block_forward.1} parent=1 // pred_region
      %2200 = dma.done [#allocation3], 256
    $region61: #{block_forward.1} parent=1 // pred_fallthru
      _
    %2201 = vsyncpa [#allocation3], 1

</llo_original>
